<compile_context>
chip_gen: v6e
topology: v6e:2x2x1
jax: 0.10.0
libtpu: 0.0.40
codegen_flags: <defaults>
</compile_context>

<pallas_src>
import math
import functools

import jax
import jax.numpy as jnp
from jax import lax
from jax.experimental import pallas as pl
from jax.experimental.pallas import tpu as pltpu


_NEG_INF = -1e30  # finite; the causal diagonal is never masked, so no NaNs


def _layernorm(x, gamma, beta, eps=1e-5):
    # torch.nn.LayerNorm: biased variance over last dim, eps inside sqrt
    mean = jnp.mean(x, axis=-1, keepdims=True)
    var = jnp.mean((x - mean) ** 2, axis=-1, keepdims=True)
    return (x - mean) * lax.rsqrt(var + eps) * gamma + beta


def _erf(x):
    # Abramowitz & Stegun 7.1.26 (max abs err ~1.5e-7); only exp/VPU ops, so it
    # lowers cleanly in Mosaic (matches torch nn.GELU's exact-erf default).
    z = jnp.abs(x)
    t = 1.0 / (1.0 + 0.3275911 * z)
    poly = ((((1.061405429 * t - 1.453152027) * t + 1.421413741) * t
             - 0.284496736) * t + 0.254829592) * t
    y = 1.0 - poly * jnp.exp(-z * z)
    return jnp.where(x >= 0, y, -y)


def _gelu_exact(x):
    return 0.5 * x * (1.0 + _erf(x * 0.7071067811865476))


def _block_kernel(n_heads, tq,
                  x_ref,
                  wq_ref, bq_ref, wk_ref, bk_ref, wv_ref, bv_ref,
                  wp_ref, bp_ref,
                  g1_ref, be1_ref,
                  w1_ref, b1_ref, w2_ref, b2_ref,
                  g2_ref, be2_ref,
                  o_ref,
                  k_scr, v_scr):
    """One transformer Block; grid = (batch, query-tile)."""
    T = x_ref.shape[1]
    C = x_ref.shape[2]
    D = C // n_heads
    scale = 1.0 / math.sqrt(D)
    t_idx = pl.program_id(1)

    # ---- once per batch element: project K/V for the whole sequence into a
    #      head-major bf16 VMEM cache that persists across the query-tile axis.
    @pl.when(t_idx == 0)
    def _fill_kv():
        x_all_bf = x_ref[0].astype(jnp.bfloat16)            # (T, C), cast once
        k = jnp.dot(x_all_bf, wk_ref[...],
                    preferred_element_type=jnp.float32) + bk_ref[...]
        v = jnp.dot(x_all_bf, wv_ref[...],
                    preferred_element_type=jnp.float32) + bv_ref[...]
        for h in range(n_heads):                             # static, fill-time only
            k_scr[h] = k[:, h * D:(h + 1) * D].astype(jnp.bfloat16)
            v_scr[h] = v[:, h * D:(h + 1) * D].astype(jnp.bfloat16)

    # ---- this step's query rows ----
    q_start = pl.multiple_of(t_idx * tq, tq)
    x_q = x_ref[0, pl.ds(q_start, tq), :]                    # (tq, C) f32
    x_q_bf = x_q.astype(jnp.bfloat16)

    q = (jnp.dot(x_q_bf, wq_ref[...], preferred_element_type=jnp.float32)
         + bq_ref[...]) * scale                              # scale folded into q
    q_bf = q.astype(jnp.bfloat16)
    qh = jnp.stack([q_bf[:, h * D:(h + 1) * D] for h in range(n_heads)],
                   axis=0)                                   # (N, tq, D) bf16

    # ---- flash-style causal attention over key tiles 0..t (online softmax) ----
    row = q_start + lax.broadcasted_iota(jnp.int32, (tq, tq), 0)   # 2-D, head-free

    def kv_step(kt, carry):
        m_prev, l_prev, acc_prev = carry
        k_start = pl.multiple_of(kt * tq, tq)
        k_blk = k_scr[:, pl.ds(k_start, tq), :]              # (N, tk, D) bf16
        v_blk = v_scr[:, pl.ds(k_start, tq), :]              # (N, tk, D) bf16
        s = jnp.einsum('nqd,nkd->nqk', qh, k_blk,
                       preferred_element_type=jnp.float32)   # (N, tq, tk) f32
        col = k_start + lax.broadcasted_iota(jnp.int32, (tq, tq), 1)
        s = jnp.where((col <= row)[None], s, _NEG_INF)
        m_cur = jnp.max(s, axis=-1, keepdims=True)
        m_new = jnp.maximum(m_prev, m_cur)
        alpha = jnp.exp(m_prev - m_new)
        p = jnp.exp(s - m_new)
        l_new = alpha * l_prev + jnp.sum(p, axis=-1, keepdims=True)
        acc_new = alpha * acc_prev + jnp.einsum(
            'nqk,nkd->nqd', p.astype(jnp.bfloat16), v_blk,
            preferred_element_type=jnp.float32)
        return m_new, l_new, acc_new

    m0 = jnp.full((n_heads, tq, 1), _NEG_INF, jnp.float32)
    l0 = jnp.zeros((n_heads, tq, 1), jnp.float32)
    a0 = jnp.zeros((n_heads, tq, D), jnp.float32)
    _, l_f, acc = lax.fori_loop(0, t_idx + 1, kv_step, (m0, l0, a0))

    inv_l = pl.reciprocal(l_f, approx=True)                  # EUP slot, ~free
    attn_h = acc * inv_l                                     # (N, tq, D) f32
    # att_drop identity in eval mode.

    # merge heads (single lane-concat pass) -> output projection (K = C matmul)
    attn = jnp.concatenate([attn_h[h] for h in range(n_heads)], axis=-1)
    attn = jnp.dot(attn.astype(jnp.bfloat16), wp_ref[...],
                   preferred_element_type=jnp.float32) + bp_ref[...]
    # proj_drop identity in eval mode.

    # ---- residual + ln1 ----
    x1 = _layernorm(x_q + attn, g1_ref[...], be1_ref[...])

    # ---- MLP: Linear(C, 4C) -> GELU(exact erf) -> Linear(4C, C) ----
    h1 = jnp.dot(x1.astype(jnp.bfloat16), w1_ref[...],
                 preferred_element_type=jnp.float32) + b1_ref[...]
    h1 = _gelu_exact(h1)
    h2 = jnp.dot(h1.astype(jnp.bfloat16), w2_ref[...],
                 preferred_element_type=jnp.float32) + b2_ref[...]
    # mlp dropout identity in eval mode.

    # ---- residual + ln2 ----
    out = _layernorm(x1 + h2, g2_ref[...], be2_ref[...])
    o_ref[0] = out.astype(o_ref.dtype)


def block_forward(x, params, n_heads, tq=None):
    B, T, C = x.shape
    H = 4 * C
    assert C % n_heads == 0, "h_dim must be divisible by n_heads"
    D = C // n_heads
    if tq is None:
        tq = min(T, 128)
    assert T % tq == 0, "T must be divisible by the query tile"
    assert tq == T or tq % 8 == 0, "query tile must be sublane aligned"
    n_qt = T // tq

    def const_spec(shape):
        # parameters: whole array resident in VMEM, same block every grid step
        # (block index never changes -> DMA'd once).
        # TODO(synk): on v7x add pipeline_mode=pl.Buffered(1) to single-buffer.
        return pl.BlockSpec(shape, lambda b, t, _n=len(shape): (0,) * _n)

    in_specs = [
        pl.BlockSpec((1, T, C), lambda b, t: (b, 0, 0)),   # x (full sequence, per b)
        const_spec((C, C)), const_spec((1, C)),            # wq, bq
        const_spec((C, C)), const_spec((1, C)),            # wk, bk
        const_spec((C, C)), const_spec((1, C)),            # wv, bv
        const_spec((C, C)), const_spec((1, C)),            # wp, bp
        const_spec((1, C)), const_spec((1, C)),            # ln1 gamma, beta
        const_spec((C, H)), const_spec((1, H)),            # mlp w1, b1
        const_spec((H, C)), const_spec((1, C)),            # mlp w2, b2
        const_spec((1, C)), const_spec((1, C)),            # ln2 gamma, beta
    ]

    # VMEM budget from actual residency (double-buffered blocks + K/V cache +
    # working-set slack) instead of a fixed constant.
    bf, f4 = 2, 4
    est = (2 * (12 * C * C) * bf                 # weight blocks (double-buffered)
           + 2 * (T * C + tq * C) * f4           # x block + out block
           + 2 * T * C * bf                      # K/V bf16 cache (scratch)
           + 4 * n_heads * tq * tq * f4          # scores / p / exp temporaries
           + 3 * tq * H * f4                     # MLP hidden temporaries
           + (4 << 20))                          # misc compiler slack
    vmem_limit = int(min(100 * 2**20, max(32 * 2**20, est)))

    kernel = functools.partial(_block_kernel, n_heads, tq)

    return pl.pallas_call(
        kernel,
        out_shape=jax.ShapeDtypeStruct((B, T, C), x.dtype),
        grid_spec=pltpu.PrefetchScalarGridSpec(
            num_scalar_prefetch=0,
            grid=(B, n_qt),
            in_specs=in_specs,
            out_specs=pl.BlockSpec((1, tq, C), lambda b, t: (b, t, 0)),
            scratch_shapes=[pltpu.VMEM((n_heads, T, D), jnp.bfloat16),   # K cache
                            pltpu.VMEM((n_heads, T, D), jnp.bfloat16)], # V cache
        ),
        compiler_params=pltpu.CompilerParams(
            # batch axis parallel (megacore), query-tile axis sequential so the
            # K/V cache filled at t==0 is valid for all later tiles of that b.
            dimension_semantics=("parallel", "arbitrary"),
            vmem_limit_bytes=vmem_limit),
    )(x, *params)


# ---------- pure-JAX reference (for correctness check) ----------
def block_reference(x, params, n_heads):
    (wq, bq, wk, bk, wv, bv, wp, bp,
     g1, be1, w1, b1, w2, b2, g2, be2) = [p.astype(jnp.float32) for p in params]
    B, T, C = x.shape
    D = C // n_heads

    def split(t):  # (B,T,C) -> (B,N,T,D)
        return t.reshape(B, T, n_heads, D).transpose(0, 2, 1, 3)

    q = split(x @ wq + bq)
    k = split(x @ wk + bk)
    v = split(x @ wv + bv)
    w = jnp.einsum("bntd,bnsd->bnts", q, k) / math.sqrt(D)
    mask = jnp.tril(jnp.ones((T, T), bool))
    w = jnp.where(mask[None, None], w, -jnp.inf)
    p = jax.nn.softmax(w, axis=-1)
    attn = jnp.einsum("bnts,bnsd->bntd", p, v)
    attn = attn.transpose(0, 2, 1, 3).reshape(B, T, C)
    attn = attn @ wp + bp

    def ln(t, g, b, eps=1e-5):
        m = t.mean(-1, keepdims=True)
        var = ((t - m) ** 2).mean(-1, keepdims=True)
        return (t - m) * lax.rsqrt(var + eps) * g + b

    x1 = ln(x + attn, g1, be1)
    h = jax.nn.gelu(x1 @ w1 + b1, approximate=False)
    x2 = ln(x1 + h @ w2 + b2, g2, be2)
    return x2


def init_params(key, h_dim, n_heads):
    C = h_dim
    H = 4 * C
    ks = jax.random.split(key, 12)
    std = 0.02

    def lin(kw, kb, n_in, n_out):
        # weights stored pre-transposed (in, out) so y = x @ W + b;
        # matmul weights shipped as bf16 (halves HBM->VMEM DMA & residency).
        w = (jax.random.normal(kw, (n_in, n_out), jnp.float32) * std).astype(jnp.bfloat16)
        b = jax.random.normal(kb, (1, n_out), jnp.float32) * std
        return w, b

    wq, bq = lin(ks[0], ks[1], C, C)
    wk, bk = lin(ks[2], ks[3], C, C)
    wv, bv = lin(ks[4], ks[5], C, C)
    wp, bp = lin(ks[6], ks[7], C, C)
    w1, b1 = lin(ks[8], ks[9], C, H)
    w2, b2 = lin(ks[10], ks[11], H, C)
    g1 = jnp.ones((1, C), jnp.float32)
    be1 = jnp.zeros((1, C), jnp.float32)
    g2 = jnp.ones((1, C), jnp.float32)
    be2 = jnp.zeros((1, C), jnp.float32)
    return (wq, bq, wk, bk, wv, bv, wp, bp,
            g1, be1, w1, b1, w2, b2, g2, be2)


if __name__ == "__main__":
    B, T, C = 2, 16, 32          # batch, seq (== max_T), h_dim
    n_heads = 2                  # head dim D = 16

    key = jax.random.PRNGKey(0)
    kx, kp = jax.random.split(key)
    x = jax.random.normal(kx, (B, T, C), jnp.float32)
    params = init_params(kp, C, n_heads)

    # tq=8 -> grid (2, 2): exercises the K/V-cache fill, the query tiling and
    # the causal key-tile loop (1 and 2 iterations).
    out = block_forward(x, params, n_heads, tq=8)
    out = jax.block_until_ready(out)

    ref = block_reference(x, params, n_heads)
    assert out.shape == (B, T, C)
    assert jnp.allclose(out, ref, atol=2e-2, rtol=2e-2), (
        float(jnp.max(jnp.abs(out - ref))))
    print("KERNEL_OK")
</pallas_src>

<mosaic_0001>
module attributes {stable_mosaic.version = 11 : i64} {
  func.func @_block_kernel(%arg0: i32, %arg1: i32, %arg2: memref<1x16x32xf32, #tpu.memory_space<vmem>>, %arg3: memref<32x32xbf16, #tpu.memory_space<vmem>>, %arg4: memref<1x32xf32, #tpu.memory_space<vmem>>, %arg5: memref<32x32xbf16, #tpu.memory_space<vmem>>, %arg6: memref<1x32xf32, #tpu.memory_space<vmem>>, %arg7: memref<32x32xbf16, #tpu.memory_space<vmem>>, %arg8: memref<1x32xf32, #tpu.memory_space<vmem>>, %arg9: memref<32x32xbf16, #tpu.memory_space<vmem>>, %arg10: memref<1x32xf32, #tpu.memory_space<vmem>>, %arg11: memref<1x32xf32, #tpu.memory_space<vmem>>, %arg12: memref<1x32xf32, #tpu.memory_space<vmem>>, %arg13: memref<32x128xbf16, #tpu.memory_space<vmem>>, %arg14: memref<1x128xf32, #tpu.memory_space<vmem>>, %arg15: memref<128x32xbf16, #tpu.memory_space<vmem>>, %arg16: memref<1x32xf32, #tpu.memory_space<vmem>>, %arg17: memref<1x32xf32, #tpu.memory_space<vmem>>, %arg18: memref<1x32xf32, #tpu.memory_space<vmem>>, %arg19: memref<1x8x32xf32, #tpu.memory_space<vmem>>, %arg20: memref<2x16x16xbf16, #tpu.memory_space<vmem>>, %arg21: memref<2x16x16xbf16, #tpu.memory_space<vmem>>) attributes {dimension_semantics = [#tpu.dimension_semantics<parallel>, #tpu.dimension_semantics<arbitrary>], iteration_bounds = array<i64: 2, 2>, scalar_prefetch = 0 : i64, scratch_operands = 2 : i64, tpu.core_type = #tpu.core_type<tc>, window_params = [{transform_indices = @transform_0, window_bounds = array<i64: 1, 16, 32>}, {pipeline_mode = #tpu.pipeline_mode<synchronous>, transform_indices = @transform_1, window_bounds = array<i64: 32, 32>}, {pipeline_mode = #tpu.pipeline_mode<synchronous>, transform_indices = @transform_2, window_bounds = array<i64: 1, 32>}, {pipeline_mode = #tpu.pipeline_mode<synchronous>, transform_indices = @transform_3, window_bounds = array<i64: 32, 32>}, {pipeline_mode = #tpu.pipeline_mode<synchronous>, transform_indices = @transform_4, window_bounds = array<i64: 1, 32>}, {pipeline_mode = #tpu.pipeline_mode<synchronous>, transform_indices = @transform_5, window_bounds = array<i64: 32, 32>}, {pipeline_mode = #tpu.pipeline_mode<synchronous>, transform_indices = @transform_6, window_bounds = array<i64: 1, 32>}, {pipeline_mode = #tpu.pipeline_mode<synchronous>, transform_indices = @transform_7, window_bounds = array<i64: 32, 32>}, {pipeline_mode = #tpu.pipeline_mode<synchronous>, transform_indices = @transform_8, window_bounds = array<i64: 1, 32>}, {pipeline_mode = #tpu.pipeline_mode<synchronous>, transform_indices = @transform_9, window_bounds = array<i64: 1, 32>}, {pipeline_mode = #tpu.pipeline_mode<synchronous>, transform_indices = @transform_10, window_bounds = array<i64: 1, 32>}, {pipeline_mode = #tpu.pipeline_mode<synchronous>, transform_indices = @transform_11, window_bounds = array<i64: 32, 128>}, {pipeline_mode = #tpu.pipeline_mode<synchronous>, transform_indices = @transform_12, window_bounds = array<i64: 1, 128>}, {pipeline_mode = #tpu.pipeline_mode<synchronous>, transform_indices = @transform_13, window_bounds = array<i64: 128, 32>}, {pipeline_mode = #tpu.pipeline_mode<synchronous>, transform_indices = @transform_14, window_bounds = array<i64: 1, 32>}, {pipeline_mode = #tpu.pipeline_mode<synchronous>, transform_indices = @transform_15, window_bounds = array<i64: 1, 32>}, {pipeline_mode = #tpu.pipeline_mode<synchronous>, transform_indices = @transform_16, window_bounds = array<i64: 1, 32>}, {transform_indices = @transform_17, window_bounds = array<i64: 1, 8, 32>}]} {
    %c0_i32 = arith.constant 0 : i32
    %0 = arith.cmpi eq, %arg1, %c0_i32 : i32
    %1 = arith.extui %0 : i1 to i32
    %c0_i32_0 = arith.constant 0 : i32
    %2 = arith.cmpi ne, %1, %c0_i32_0 : i32
    scf.if %2 {
      %c0_63 = arith.constant 0 : index
      %c0_64 = arith.constant 0 : index
      %c0_65 = arith.constant 0 : index
      %151 = vector.load %arg2[%c0_63, %c0_64, %c0_65] : memref<1x16x32xf32, #tpu.memory_space<vmem>>, vector<1x16x32xf32>
      %152 = vector.shape_cast %151 : vector<1x16x32xf32> to vector<16x32xf32>
      %153 = arith.truncf %152 : vector<16x32xf32> to vector<16x32xbf16>
      %c0_66 = arith.constant 0 : index
      %c0_67 = arith.constant 0 : index
      %154 = vector.load %arg5[%c0_66, %c0_67] : memref<32x32xbf16, #tpu.memory_space<vmem>>, vector<32x32xbf16>
      %cst_68 = arith.constant dense<0.000000e+00> : vector<16x32xf32>
      %155 = tpu.matmul %153, %154, %cst_68 {dimension_numbers = #tpu.dot_dimension_numbers<[1], [0], [0], [1], [0, 0, 1, 1], [], []>} : vector<16x32xbf16>, vector<32x32xbf16>, vector<16x32xf32> -> vector<16x32xf32>
      %c0_69 = arith.constant 0 : index
      %c0_70 = arith.constant 0 : index
      %156 = vector.load %arg6[%c0_69, %c0_70] : memref<1x32xf32, #tpu.memory_space<vmem>>, vector<1x32xf32>
      %157 = vector.broadcast %156 : vector<1x32xf32> to vector<16x32xf32>
      %158 = arith.addf %155, %157 : vector<16x32xf32>
      %c0_71 = arith.constant 0 : index
      %c0_72 = arith.constant 0 : index
      %159 = vector.load %arg7[%c0_71, %c0_72] : memref<32x32xbf16, #tpu.memory_space<vmem>>, vector<32x32xbf16>
      %cst_73 = arith.constant dense<0.000000e+00> : vector<16x32xf32>
      %160 = tpu.matmul %153, %159, %cst_73 {dimension_numbers = #tpu.dot_dimension_numbers<[1], [0], [0], [1], [0, 0, 1, 1], [], []>} : vector<16x32xbf16>, vector<32x32xbf16>, vector<16x32xf32> -> vector<16x32xf32>
      %c0_74 = arith.constant 0 : index
      %c0_75 = arith.constant 0 : index
      %161 = vector.load %arg8[%c0_74, %c0_75] : memref<1x32xf32, #tpu.memory_space<vmem>>, vector<1x32xf32>
      %162 = vector.broadcast %161 : vector<1x32xf32> to vector<16x32xf32>
      %163 = arith.addf %160, %162 : vector<16x32xf32>
      %164 = vector.extract_strided_slice %158 {offsets = [0, 0], sizes = [16, 16], strides = [1, 1]} : vector<16x32xf32> to vector<16x16xf32>
      %165 = arith.truncf %164 : vector<16x16xf32> to vector<16x16xbf16>
      %c0_76 = arith.constant 0 : index
      %c0_77 = arith.constant 0 : index
      %c0_78 = arith.constant 0 : index
      %166 = vector.load %arg20[%c0_76, %c0_77, %c0_78] : memref<2x16x16xbf16, #tpu.memory_space<vmem>>, vector<1x16x16xbf16>
      %167 = vector.shape_cast %166 : vector<1x16x16xbf16> to vector<16x16xbf16>
      %168 = vector.shape_cast %165 : vector<16x16xbf16> to vector<1x16x16xbf16>
      tpu.vector_store %arg20[%c0_76, %c0_77, %c0_78], %168 {strides = array<i32>} : memref<2x16x16xbf16, #tpu.memory_space<vmem>>, vector<1x16x16xbf16>,
      %169 = vector.extract_strided_slice %163 {offsets = [0, 0], sizes = [16, 16], strides = [1, 1]} : vector<16x32xf32> to vector<16x16xf32>
      %170 = arith.truncf %169 : vector<16x16xf32> to vector<16x16xbf16>
      %c0_79 = arith.constant 0 : index
      %c0_80 = arith.constant 0 : index
      %c0_81 = arith.constant 0 : index
      %171 = vector.load %arg21[%c0_79, %c0_80, %c0_81] : memref<2x16x16xbf16, #tpu.memory_space<vmem>>, vector<1x16x16xbf16>
      %172 = vector.shape_cast %171 : vector<1x16x16xbf16> to vector<16x16xbf16>
      %173 = vector.shape_cast %170 : vector<16x16xbf16> to vector<1x16x16xbf16>
      tpu.vector_store %arg21[%c0_79, %c0_80, %c0_81], %173 {strides = array<i32>} : memref<2x16x16xbf16, #tpu.memory_space<vmem>>, vector<1x16x16xbf16>,
      %174 = vector.extract_strided_slice %158 {offsets = [0, 16], sizes = [16, 16], strides = [1, 1]} : vector<16x32xf32> to vector<16x16xf32>
      %175 = arith.truncf %174 : vector<16x16xf32> to vector<16x16xbf16>
      %c1 = arith.constant 1 : index
      %c0_82 = arith.constant 0 : index
      %c0_83 = arith.constant 0 : index
      %176 = vector.load %arg20[%c1, %c0_82, %c0_83] : memref<2x16x16xbf16, #tpu.memory_space<vmem>>, vector<1x16x16xbf16>
      %177 = vector.shape_cast %176 : vector<1x16x16xbf16> to vector<16x16xbf16>
      %178 = vector.shape_cast %175 : vector<16x16xbf16> to vector<1x16x16xbf16>
      tpu.vector_store %arg20[%c1, %c0_82, %c0_83], %178 {strides = array<i32>} : memref<2x16x16xbf16, #tpu.memory_space<vmem>>, vector<1x16x16xbf16>,
      %179 = vector.extract_strided_slice %163 {offsets = [0, 16], sizes = [16, 16], strides = [1, 1]} : vector<16x32xf32> to vector<16x16xf32>
      %180 = arith.truncf %179 : vector<16x16xf32> to vector<16x16xbf16>
      %c1_84 = arith.constant 1 : index
      %c0_85 = arith.constant 0 : index
      %c0_86 = arith.constant 0 : index
      %181 = vector.load %arg21[%c1_84, %c0_85, %c0_86] : memref<2x16x16xbf16, #tpu.memory_space<vmem>>, vector<1x16x16xbf16>
      %182 = vector.shape_cast %181 : vector<1x16x16xbf16> to vector<16x16xbf16>
      %183 = vector.shape_cast %180 : vector<16x16xbf16> to vector<1x16x16xbf16>
      tpu.vector_store %arg21[%c1_84, %c0_85, %c0_86], %183 {strides = array<i32>} : memref<2x16x16xbf16, #tpu.memory_space<vmem>>, vector<1x16x16xbf16>,
    } else {
    }
    %c8_i32 = arith.constant 8 : i32
    %3 = arith.muli %arg1, %c8_i32 : i32
    %4 = tpu.assume_multiple %3, 8 : i32
    %c0 = arith.constant 0 : index
    %5 = arith.index_cast %4 : i32 to index
    %c0_1 = arith.constant 0 : index
    %6 = vector.load %arg2[%c0, %5, %c0_1] : memref<1x16x32xf32, #tpu.memory_space<vmem>>, vector<1x8x32xf32>
    %7 = vector.shape_cast %6 : vector<1x8x32xf32> to vector<8x32xf32>
    %8 = arith.truncf %7 : vector<8x32xf32> to vector<8x32xbf16>
    %c0_2 = arith.constant 0 : index
    %c0_3 = arith.constant 0 : index
    %9 = vector.load %arg3[%c0_2, %c0_3] : memref<32x32xbf16, #tpu.memory_space<vmem>>, vector<32x32xbf16>
    %cst = arith.constant dense<0.000000e+00> : vector<8x32xf32>
    %10 = tpu.matmul %8, %9, %cst {dimension_numbers = #tpu.dot_dimension_numbers<[1], [0], [0], [1], [0, 0, 1, 1], [], []>} : vector<8x32xbf16>, vector<32x32xbf16>, vector<8x32xf32> -> vector<8x32xf32>
    %c0_4 = arith.constant 0 : index
    %c0_5 = arith.constant 0 : index
    %11 = vector.load %arg4[%c0_4, %c0_5] : memref<1x32xf32, #tpu.memory_space<vmem>>, vector<1x32xf32>
    %12 = vector.broadcast %11 : vector<1x32xf32> to vector<8x32xf32>
    %13 = arith.addf %10, %12 : vector<8x32xf32>
    %cst_6 = arith.constant 2.500000e-01 : f32
    %14 = vector.broadcast %cst_6 : f32 to vector<8x32xf32>
    %15 = arith.mulf %13, %14 : vector<8x32xf32>
    %16 = arith.truncf %15 : vector<8x32xf32> to vector<8x32xbf16>
    %17 = vector.extract_strided_slice %16 {offsets = [0, 0], sizes = [8, 16], strides = [1, 1]} : vector<8x32xbf16> to vector<8x16xbf16>
    %18 = vector.extract_strided_slice %16 {offsets = [0, 16], sizes = [8, 16], strides = [1, 1]} : vector<8x32xbf16> to vector<8x16xbf16>
    %19 = vector.shape_cast %17 : vector<8x16xbf16> to vector<1x8x16xbf16>
    %20 = vector.shape_cast %18 : vector<8x16xbf16> to vector<1x8x16xbf16>
    %21 = tpu.concatenate %19, %20 in 0 : vector<1x8x16xbf16>, vector<1x8x16xbf16> -> vector<2x8x16xbf16>
    %22 = tpu.iota {dimensions = array<i32: 0>} : vector<8x8xi32>
    %23 = vector.broadcast %4 : i32 to vector<8x8xi32>
    %24 = arith.addi %23, %22 : vector<8x8xi32>
    %cst_7 = arith.constant -1.000000e+30 : f32
    %25 = vector.broadcast %cst_7 : f32 to vector<2x8x1xf32>
    %cst_8 = arith.constant 0.000000e+00 : f32
    %26 = vector.broadcast %cst_8 : f32 to vector<2x8x1xf32>
    %cst_9 = arith.constant 0.000000e+00 : f32
    %27 = vector.broadcast %cst_9 : f32 to vector<2x8x16xf32>
    %c1_i32 = arith.constant 1 : i32
    %28 = arith.addi %arg1, %c1_i32 : i32
    %c0_i32_10 = arith.constant 0 : i32
    %29 = arith.subi %28, %c0_i32_10 : i32
    %30 = arith.addi %c0_i32_10, %29 : i32
    %c1_i32_11 = arith.constant 1 : i32
    %31:3 = scf.for %arg22 = %c0_i32_10 to %30 step %c1_i32_11 iter_args(%arg23 = %25, %arg24 = %26, %arg25 = %27) -> (vector<2x8x1xf32>, vector<2x8x1xf32>, vector<2x8x16xf32>)  : i32 {
      %c8_i32_63 = arith.constant 8 : i32
      %151 = arith.muli %arg22, %c8_i32_63 : i32
      %152 = tpu.assume_multiple %151, 8 : i32
      %c0_64 = arith.constant 0 : index
      %153 = arith.index_cast %152 : i32 to index
      %c0_65 = arith.constant 0 : index
      %154 = vector.load %arg20[%c0_64, %153, %c0_65] : memref<2x16x16xbf16, #tpu.memory_space<vmem>>, vector<2x8x16xbf16>
      %c0_66 = arith.constant 0 : index
      %155 = arith.index_cast %152 : i32 to index
      %c0_67 = arith.constant 0 : index
      %156 = vector.load %arg21[%c0_66, %155, %c0_67] : memref<2x16x16xbf16, #tpu.memory_space<vmem>>, vector<2x8x16xbf16>
      "tpu.trace_start"() <{level = 10 : i32, message = "nqd,nkd->nqk"}> : () -> ()
      %cst_68 = arith.constant dense<0.000000e+00> : vector<2x8x8xf32>
      %157 = tpu.matmul %21, %154, %cst_68 {dimension_numbers = #tpu.dot_dimension_numbers<[2], [2], [1], [1], [0, 0, 0, 1, 1, 1], [0], [0]>} : vector<2x8x16xbf16>, vector<2x8x16xbf16>, vector<2x8x8xf32> -> vector<2x8x8xf32>
      "tpu.trace_stop"() : () -> ()
      %158 = tpu.iota {dimensions = array<i32: 1>} : vector<8x8xi32>
      %159 = vector.broadcast %152 : i32 to vector<8x8xi32>
      %160 = arith.addi %159, %158 : vector<8x8xi32>
      %161 = arith.cmpi sle, %160, %24 : vector<8x8xi32>
      %162 = vector.shape_cast %161 : vector<8x8xi1> to vector<1x8x8xi1>
      %cst_69 = arith.constant -1.000000e+30 : f32
      %163 = vector.shape_cast %162 : vector<1x8x8xi1> to vector<1x8x8xi1>
      %164 = vector.broadcast %163 : vector<1x8x8xi1> to vector<2x8x8xi1>
      %165 = vector.broadcast %cst_69 : f32 to vector<2x8x8xf32>
      %166 = arith.select %164, %157, %165 : vector<2x8x8xi1>, vector<2x8x8xf32>
      %cst_70 = arith.constant dense<0xFF800000> : vector<2x8xf32>
      %167 = vector.multi_reduction <maximumf>, %166, %cst_70 [2] : vector<2x8x8xf32> to vector<2x8xf32>
      %168 = vector.shape_cast %167 : vector<2x8xf32> to vector<2x8x1xf32>
      %169 = arith.maximumf %arg23, %168 : vector<2x8x1xf32>
      %170 = arith.subf %arg23, %169 : vector<2x8x1xf32>
      %171 = math.exp %170 : vector<2x8x1xf32>
      %172 = vector.broadcast %169 : vector<2x8x1xf32> to vector<2x8x8xf32>
      %173 = arith.subf %166, %172 : vector<2x8x8xf32>
      %174 = math.exp %173 : vector<2x8x8xf32>
      %175 = arith.mulf %171, %arg24 : vector<2x8x1xf32>
      %cst_71 = arith.constant dense<0.000000e+00> : vector<2x8xf32>
      %176 = vector.multi_reduction <add>, %174, %cst_71 [2] : vector<2x8x8xf32> to vector<2x8xf32>
      %177 = vector.shape_cast %176 : vector<2x8xf32> to vector<2x8x1xf32>
      %178 = arith.addf %175, %177 : vector<2x8x1xf32>
      %179 = vector.broadcast %171 : vector<2x8x1xf32> to vector<2x8x16xf32>
      %180 = arith.mulf %179, %arg25 : vector<2x8x16xf32>
      %181 = arith.truncf %174 : vector<2x8x8xf32> to vector<2x8x8xbf16>
      "tpu.trace_start"() <{level = 10 : i32, message = "nqk,nkd->nqd"}> : () -> ()
      %cst_72 = arith.constant dense<0.000000e+00> : vector<2x8x16xf32>
      %182 = tpu.matmul %181, %156, %cst_72 {dimension_numbers = #tpu.dot_dimension_numbers<[2], [1], [1], [2], [0, 0, 0, 1, 1, 2], [0], [0]>} : vector<2x8x8xbf16>, vector<2x8x16xbf16>, vector<2x8x16xf32> -> vector<2x8x16xf32>
      "tpu.trace_stop"() : () -> ()
      %183 = arith.addf %180, %182 : vector<2x8x16xf32>
      scf.yield %169, %178, %183 : vector<2x8x1xf32>, vector<2x8x1xf32>, vector<2x8x16xf32>
    }
    %32 = tpu.reciprocal %31#1 {approx = true} : vector<2x8x1xf32> -> vector<2x8x1xf32>
    %33 = vector.broadcast %32 : vector<2x8x1xf32> to vector<2x8x16xf32>
    %34 = arith.mulf %31#2, %33 : vector<2x8x16xf32>
    %35 = vector.extract_strided_slice %34 {offsets = [0, 0, 0], sizes = [1, 8, 16], strides = [1, 1, 1]} : vector<2x8x16xf32> to vector<1x8x16xf32>
    %36 = vector.shape_cast %35 : vector<1x8x16xf32> to vector<8x16xf32>
    %37 = vector.extract_strided_slice %34 {offsets = [1, 0, 0], sizes = [1, 8, 16], strides = [1, 1, 1]} : vector<2x8x16xf32> to vector<1x8x16xf32>
    %38 = vector.shape_cast %37 : vector<1x8x16xf32> to vector<8x16xf32>
    %39 = tpu.concatenate %36, %38 in 1 : vector<8x16xf32>, vector<8x16xf32> -> vector<8x32xf32>
    %40 = arith.truncf %39 : vector<8x32xf32> to vector<8x32xbf16>
    %c0_12 = arith.constant 0 : index
    %c0_13 = arith.constant 0 : index
    %41 = vector.load %arg9[%c0_12, %c0_13] : memref<32x32xbf16, #tpu.memory_space<vmem>>, vector<32x32xbf16>
    %cst_14 = arith.constant dense<0.000000e+00> : vector<8x32xf32>
    %42 = tpu.matmul %40, %41, %cst_14 {dimension_numbers = #tpu.dot_dimension_numbers<[1], [0], [0], [1], [0, 0, 1, 1], [], []>} : vector<8x32xbf16>, vector<32x32xbf16>, vector<8x32xf32> -> vector<8x32xf32>
    %c0_15 = arith.constant 0 : index
    %c0_16 = arith.constant 0 : index
    %43 = vector.load %arg10[%c0_15, %c0_16] : memref<1x32xf32, #tpu.memory_space<vmem>>, vector<1x32xf32>
    %44 = vector.broadcast %43 : vector<1x32xf32> to vector<8x32xf32>
    %45 = arith.addf %42, %44 : vector<8x32xf32>
    %46 = arith.addf %7, %45 : vector<8x32xf32>
    %c0_17 = arith.constant 0 : index
    %c0_18 = arith.constant 0 : index
    %47 = vector.load %arg11[%c0_17, %c0_18] : memref<1x32xf32, #tpu.memory_space<vmem>>, vector<1x32xf32>
    %c0_19 = arith.constant 0 : index
    %c0_20 = arith.constant 0 : index
    %48 = vector.load %arg12[%c0_19, %c0_20] : memref<1x32xf32, #tpu.memory_space<vmem>>, vector<1x32xf32>
    %cst_21 = arith.constant dense<0.000000e+00> : vector<8xf32>
    %49 = vector.multi_reduction <add>, %46, %cst_21 [1] : vector<8x32xf32> to vector<8xf32>
    %50 = vector.shape_cast %49 : vector<8xf32> to vector<8x1xf32>
    %cst_22 = arith.constant 3.200000e+01 : f32
    %51 = vector.broadcast %cst_22 : f32 to vector<8x1xf32>
    %52 = arith.divf %50, %51 : vector<8x1xf32>
    %53 = vector.broadcast %52 : vector<8x1xf32> to vector<8x32xf32>
    %54 = arith.subf %46, %53 : vector<8x32xf32>
    %55 = arith.mulf %54, %54 : vector<8x32xf32>
    %cst_23 = arith.constant dense<0.000000e+00> : vector<8xf32>
    %56 = vector.multi_reduction <add>, %55, %cst_23 [1] : vector<8x32xf32> to vector<8xf32>
    %57 = vector.shape_cast %56 : vector<8xf32> to vector<8x1xf32>
    %cst_24 = arith.constant 3.200000e+01 : f32
    %58 = vector.broadcast %cst_24 : f32 to vector<8x1xf32>
    %59 = arith.divf %57, %58 : vector<8x1xf32>
    %60 = vector.broadcast %52 : vector<8x1xf32> to vector<8x32xf32>
    %61 = arith.subf %46, %60 : vector<8x32xf32>
    %cst_25 = arith.constant 9.99999974E-6 : f32
    %62 = vector.broadcast %cst_25 : f32 to vector<8x1xf32>
    %63 = arith.addf %59, %62 : vector<8x1xf32>
    %64 = math.rsqrt %63 : vector<8x1xf32>
    %65 = vector.broadcast %64 : vector<8x1xf32> to vector<8x32xf32>
    %66 = arith.mulf %61, %65 : vector<8x32xf32>
    %67 = vector.broadcast %47 : vector<1x32xf32> to vector<8x32xf32>
    %68 = arith.mulf %66, %67 : vector<8x32xf32>
    %69 = vector.broadcast %48 : vector<1x32xf32> to vector<8x32xf32>
    %70 = arith.addf %68, %69 : vector<8x32xf32>
    %71 = arith.truncf %70 : vector<8x32xf32> to vector<8x32xbf16>
    %c0_26 = arith.constant 0 : index
    %c0_27 = arith.constant 0 : index
    %72 = vector.load %arg13[%c0_26, %c0_27] : memref<32x128xbf16, #tpu.memory_space<vmem>>, vector<32x128xbf16>
    %cst_28 = arith.constant dense<0.000000e+00> : vector<8x128xf32>
    %73 = tpu.matmul %71, %72, %cst_28 {dimension_numbers = #tpu.dot_dimension_numbers<[1], [0], [0], [1], [0, 0, 1, 1], [], []>} : vector<8x32xbf16>, vector<32x128xbf16>, vector<8x128xf32> -> vector<8x128xf32>
    %c0_29 = arith.constant 0 : index
    %c0_30 = arith.constant 0 : index
    %74 = vector.load %arg14[%c0_29, %c0_30] : memref<1x128xf32, #tpu.memory_space<vmem>>, vector<1x128xf32>
    %75 = vector.broadcast %74 : vector<1x128xf32> to vector<8x128xf32>
    %76 = arith.addf %73, %75 : vector<8x128xf32>
    %cst_31 = arith.constant 5.000000e-01 : f32
    %77 = vector.broadcast %cst_31 : f32 to vector<8x128xf32>
    %78 = arith.mulf %77, %76 : vector<8x128xf32>
    %cst_32 = arith.constant 0.707106769 : f32
    %79 = vector.broadcast %cst_32 : f32 to vector<8x128xf32>
    %80 = arith.mulf %76, %79 : vector<8x128xf32>
    %81 = math.absf %80 : vector<8x128xf32>
    %cst_33 = arith.constant 0.327591091 : f32
    %82 = vector.broadcast %cst_33 : f32 to vector<8x128xf32>
    %83 = arith.mulf %82, %81 : vector<8x128xf32>
    %cst_34 = arith.constant 1.000000e+00 : f32
    %84 = vector.broadcast %cst_34 : f32 to vector<8x128xf32>
    %85 = arith.addf %84, %83 : vector<8x128xf32>
    %cst_35 = arith.constant 1.000000e+00 : f32
    %86 = vector.broadcast %cst_35 : f32 to vector<8x128xf32>
    %87 = arith.divf %86, %85 : vector<8x128xf32>
    %cst_36 = arith.constant 1.06140542 : f32
    %88 = vector.broadcast %cst_36 : f32 to vector<8x128xf32>
    %89 = arith.mulf %88, %87 : vector<8x128xf32>
    %cst_37 = arith.constant 1.45315206 : f32
    %90 = vector.broadcast %cst_37 : f32 to vector<8x128xf32>
    %91 = arith.subf %89, %90 : vector<8x128xf32>
    %92 = arith.mulf %91, %87 : vector<8x128xf32>
    %cst_38 = arith.constant 1.42141378 : f32
    %93 = vector.broadcast %cst_38 : f32 to vector<8x128xf32>
    %94 = arith.addf %92, %93 : vector<8x128xf32>
    %95 = arith.mulf %94, %87 : vector<8x128xf32>
    %cst_39 = arith.constant 0.284496725 : f32
    %96 = vector.broadcast %cst_39 : f32 to vector<8x128xf32>
    %97 = arith.subf %95, %96 : vector<8x128xf32>
    %98 = arith.mulf %97, %87 : vector<8x128xf32>
    %cst_40 = arith.constant 0.254829586 : f32
    %99 = vector.broadcast %cst_40 : f32 to vector<8x128xf32>
    %100 = arith.addf %98, %99 : vector<8x128xf32>
    %101 = arith.mulf %100, %87 : vector<8x128xf32>
    %cst_41 = arith.constant 0.000000e+00 : f32
    %102 = vector.broadcast %cst_41 : f32 to vector<8x128xf32>
    %103 = arith.subf %102, %81 : vector<8x128xf32>
    %104 = arith.mulf %103, %81 : vector<8x128xf32>
    %105 = math.exp %104 : vector<8x128xf32>
    %106 = arith.mulf %101, %105 : vector<8x128xf32>
    %cst_42 = arith.constant 1.000000e+00 : f32
    %107 = vector.broadcast %cst_42 : f32 to vector<8x128xf32>
    %108 = arith.subf %107, %106 : vector<8x128xf32>
    %cst_43 = arith.constant 0.000000e+00 : f32
    %109 = vector.broadcast %cst_43 : f32 to vector<8x128xf32>
    %110 = arith.cmpf oge, %80, %109 : vector<8x128xf32>
    %cst_44 = arith.constant 0.000000e+00 : f32
    %111 = vector.broadcast %cst_44 : f32 to vector<8x128xf32>
    %112 = arith.subf %111, %108 : vector<8x128xf32>
    %113 = arith.select %110, %108, %112 : vector<8x128xi1>, vector<8x128xf32>
    %cst_45 = arith.constant 1.000000e+00 : f32
    %114 = vector.broadcast %cst_45 : f32 to vector<8x128xf32>
    %115 = arith.addf %114, %113 : vector<8x128xf32>
    %116 = arith.mulf %78, %115 : vector<8x128xf32>
    %117 = arith.truncf %116 : vector<8x128xf32> to vector<8x128xbf16>
    %c0_46 = arith.constant 0 : index
    %c0_47 = arith.constant 0 : index
    %118 = vector.load %arg15[%c0_46, %c0_47] : memref<128x32xbf16, #tpu.memory_space<vmem>>, vector<128x32xbf16>
    %cst_48 = arith.constant dense<0.000000e+00> : vector<8x32xf32>
    %119 = tpu.matmul %117, %118, %cst_48 {dimension_numbers = #tpu.dot_dimension_numbers<[1], [0], [0], [1], [0, 0, 1, 1], [], []>} : vector<8x128xbf16>, vector<128x32xbf16>, vector<8x32xf32> -> vector<8x32xf32>
    %c0_49 = arith.constant 0 : index
    %c0_50 = arith.constant 0 : index
    %120 = vector.load %arg16[%c0_49, %c0_50] : memref<1x32xf32, #tpu.memory_space<vmem>>, vector<1x32xf32>
    %121 = vector.broadcast %120 : vector<1x32xf32> to vector<8x32xf32>
    %122 = arith.addf %119, %121 : vector<8x32xf32>
    %123 = arith.addf %70, %122 : vector<8x32xf32>
    %c0_51 = arith.constant 0 : index
    %c0_52 = arith.constant 0 : index
    %124 = vector.load %arg17[%c0_51, %c0_52] : memref<1x32xf32, #tpu.memory_space<vmem>>, vector<1x32xf32>
    %c0_53 = arith.constant 0 : index
    %c0_54 = arith.constant 0 : index
    %125 = vector.load %arg18[%c0_53, %c0_54] : memref<1x32xf32, #tpu.memory_space<vmem>>, vector<1x32xf32>
    %cst_55 = arith.constant dense<0.000000e+00> : vector<8xf32>
    %126 = vector.multi_reduction <add>, %123, %cst_55 [1] : vector<8x32xf32> to vector<8xf32>
    %127 = vector.shape_cast %126 : vector<8xf32> to vector<8x1xf32>
    %cst_56 = arith.constant 3.200000e+01 : f32
    %128 = vector.broadcast %cst_56 : f32 to vector<8x1xf32>
    %129 = arith.divf %127, %128 : vector<8x1xf32>
    %130 = vector.broadcast %129 : vector<8x1xf32> to vector<8x32xf32>
    %131 = arith.subf %123, %130 : vector<8x32xf32>
    %132 = arith.mulf %131, %131 : vector<8x32xf32>
    %cst_57 = arith.constant dense<0.000000e+00> : vector<8xf32>
    %133 = vector.multi_reduction <add>, %132, %cst_57 [1] : vector<8x32xf32> to vector<8xf32>
    %134 = vector.shape_cast %133 : vector<8xf32> to vector<8x1xf32>
    %cst_58 = arith.constant 3.200000e+01 : f32
    %135 = vector.broadcast %cst_58 : f32 to vector<8x1xf32>
    %136 = arith.divf %134, %135 : vector<8x1xf32>
    %137 = vector.broadcast %129 : vector<8x1xf32> to vector<8x32xf32>
    %138 = arith.subf %123, %137 : vector<8x32xf32>
    %cst_59 = arith.constant 9.99999974E-6 : f32
    %139 = vector.broadcast %cst_59 : f32 to vector<8x1xf32>
    %140 = arith.addf %136, %139 : vector<8x1xf32>
    %141 = math.rsqrt %140 : vector<8x1xf32>
    %142 = vector.broadcast %141 : vector<8x1xf32> to vector<8x32xf32>
    %143 = arith.mulf %138, %142 : vector<8x32xf32>
    %144 = vector.broadcast %124 : vector<1x32xf32> to vector<8x32xf32>
    %145 = arith.mulf %143, %144 : vector<8x32xf32>
    %146 = vector.broadcast %125 : vector<1x32xf32> to vector<8x32xf32>
    %147 = arith.addf %145, %146 : vector<8x32xf32>
    %c0_60 = arith.constant 0 : index
    %c0_61 = arith.constant 0 : index
    %c0_62 = arith.constant 0 : index
    %148 = vector.load %arg19[%c0_60, %c0_61, %c0_62] : memref<1x8x32xf32, #tpu.memory_space<vmem>>, vector<1x8x32xf32>
    %149 = vector.shape_cast %148 : vector<1x8x32xf32> to vector<8x32xf32>
    %150 = vector.shape_cast %147 : vector<8x32xf32> to vector<1x8x32xf32>
    tpu.vector_store %arg19[%c0_60, %c0_61, %c0_62], %150 {strides = array<i32>} : memref<1x8x32xf32, #tpu.memory_space<vmem>>, vector<1x8x32xf32>,
    return
  }
  func.func @transform_0(%arg0: i32, %arg1: i32) -> (i32, i32, i32) {
    %c0_i32 = arith.constant 0 : i32
    %c0_i32_0 = arith.constant 0 : i32
    %c0_i32_1 = arith.constant 0 : i32
    return %arg0, %c0_i32, %c0_i32_0 : i32, i32, i32
  }
  func.func @transform_1(%arg0: i32, %arg1: i32) -> (i32, i32) {
    %c0_i32 = arith.constant 0 : i32
    %c0_i32_0 = arith.constant 0 : i32
    %c0_i32_1 = arith.constant 0 : i32
    return %c0_i32, %c0_i32_0 : i32, i32
  }
  func.func @transform_2(%arg0: i32, %arg1: i32) -> (i32, i32) {
    %c0_i32 = arith.constant 0 : i32
    %c0_i32_0 = arith.constant 0 : i32
    %c0_i32_1 = arith.constant 0 : i32
    return %c0_i32, %c0_i32_0 : i32, i32
  }
  func.func @transform_3(%arg0: i32, %arg1: i32) -> (i32, i32) {
    %c0_i32 = arith.constant 0 : i32
    %c0_i32_0 = arith.constant 0 : i32
    %c0_i32_1 = arith.constant 0 : i32
    return %c0_i32, %c0_i32_0 : i32, i32
  }
  func.func @transform_4(%arg0: i32, %arg1: i32) -> (i32, i32) {
    %c0_i32 = arith.constant 0 : i32
    %c0_i32_0 = arith.constant 0 : i32
    %c0_i32_1 = arith.constant 0 : i32
    return %c0_i32, %c0_i32_0 : i32, i32
  }
  func.func @transform_5(%arg0: i32, %arg1: i32) -> (i32, i32) {
    %c0_i32 = arith.constant 0 : i32
    %c0_i32_0 = arith.constant 0 : i32
    %c0_i32_1 = arith.constant 0 : i32
    return %c0_i32, %c0_i32_0 : i32, i32
  }
  func.func @transform_6(%arg0: i32, %arg1: i32) -> (i32, i32) {
    %c0_i32 = arith.constant 0 : i32
    %c0_i32_0 = arith.constant 0 : i32
    %c0_i32_1 = arith.constant 0 : i32
    return %c0_i32, %c0_i32_0 : i32, i32
  }
  func.func @transform_7(%arg0: i32, %arg1: i32) -> (i32, i32) {
    %c0_i32 = arith.constant 0 : i32
    %c0_i32_0 = arith.constant 0 : i32
    %c0_i32_1 = arith.constant 0 : i32
    return %c0_i32, %c0_i32_0 : i32, i32
  }
  func.func @transform_8(%arg0: i32, %arg1: i32) -> (i32, i32) {
    %c0_i32 = arith.constant 0 : i32
    %c0_i32_0 = arith.constant 0 : i32
    %c0_i32_1 = arith.constant 0 : i32
    return %c0_i32, %c0_i32_0 : i32, i32
  }
  func.func @transform_9(%arg0: i32, %arg1: i32) -> (i32, i32) {
    %c0_i32 = arith.constant 0 : i32
    %c0_i32_0 = arith.constant 0 : i32
    %c0_i32_1 = arith.constant 0 : i32
    return %c0_i32, %c0_i32_0 : i32, i32
  }
  func.func @transform_10(%arg0: i32, %arg1: i32) -> (i32, i32) {
    %c0_i32 = arith.constant 0 : i32
    %c0_i32_0 = arith.constant 0 : i32
    %c0_i32_1 = arith.constant 0 : i32
    return %c0_i32, %c0_i32_0 : i32, i32
  }
  func.func @transform_11(%arg0: i32, %arg1: i32) -> (i32, i32) {
    %c0_i32 = arith.constant 0 : i32
    %c0_i32_0 = arith.constant 0 : i32
    %c0_i32_1 = arith.constant 0 : i32
    return %c0_i32, %c0_i32_0 : i32, i32
  }
  func.func @transform_12(%arg0: i32, %arg1: i32) -> (i32, i32) {
    %c0_i32 = arith.constant 0 : i32
    %c0_i32_0 = arith.constant 0 : i32
    %c0_i32_1 = arith.constant 0 : i32
    return %c0_i32, %c0_i32_0 : i32, i32
  }
  func.func @transform_13(%arg0: i32, %arg1: i32) -> (i32, i32) {
    %c0_i32 = arith.constant 0 : i32
    %c0_i32_0 = arith.constant 0 : i32
    %c0_i32_1 = arith.constant 0 : i32
    return %c0_i32, %c0_i32_0 : i32, i32
  }
  func.func @transform_14(%arg0: i32, %arg1: i32) -> (i32, i32) {
    %c0_i32 = arith.constant 0 : i32
    %c0_i32_0 = arith.constant 0 : i32
    %c0_i32_1 = arith.constant 0 : i32
    return %c0_i32, %c0_i32_0 : i32, i32
  }
  func.func @transform_15(%arg0: i32, %arg1: i32) -> (i32, i32) {
    %c0_i32 = arith.constant 0 : i32
    %c0_i32_0 = arith.constant 0 : i32
    %c0_i32_1 = arith.constant 0 : i32
    return %c0_i32, %c0_i32_0 : i32, i32
  }
  func.func @transform_16(%arg0: i32, %arg1: i32) -> (i32, i32) {
    %c0_i32 = arith.constant 0 : i32
    %c0_i32_0 = arith.constant 0 : i32
    %c0_i32_1 = arith.constant 0 : i32
    return %c0_i32, %c0_i32_0 : i32, i32
  }
  func.func @transform_17(%arg0: i32, %arg1: i32) -> (i32, i32, i32) {
    %c0_i32 = arith.constant 0 : i32
    %c0_i32_0 = arith.constant 0 : i32
    return %arg0, %arg1, %c0_i32 : i32, i32, i32
  }
}

</mosaic_0001>

<llo_original>
// kernel: tpu_custom_call.1
$region0: #{tpu_custom_call.1}
  #allocation0 [shape = 'u32[]', space=smem, size = 0x4, offset = 0x4, fixed_abs, tag = 'smem constant byte address 0x4 - core index']
  #allocation1 [shape = 'u32[144,128]{1,0:T(1,128)}', space=vmem, size = 0x12000, scoped, tag = 'internal scratch']
  #allocation2 [shape = 'bf16[2,16,16]{2,1,0:T(8,128)(2,1)}', space=vmem, size = 0x2000, scoped, tag = 'scratch operand']
  #allocation3 [shape = 'bf16[2,16,16]{2,1,0:T(8,128)(2,1)}', space=vmem, size = 0x2000, scoped, tag = 'scratch operand']
  %s0 = inlined_call_operand.vmem [shape: f32[2,16,32], index: 0, kind: input, shape index: {}]
  %s1 = inlined_call_operand.vmem [shape: bf16[32,32], index: 1, kind: input, shape index: {}]
  %s2 = inlined_call_operand.hbm [shape: f32[1,32], index: 2, kind: input, shape index: {}]
  %s3 = inlined_call_operand.vmem [shape: bf16[32,32], index: 3, kind: input, shape index: {}]
  %s4 = inlined_call_operand.hbm [shape: f32[1,32], index: 4, kind: input, shape index: {}]
  %s5 = inlined_call_operand.vmem [shape: bf16[32,32], index: 5, kind: input, shape index: {}]
  %s6 = inlined_call_operand.hbm [shape: f32[1,32], index: 6, kind: input, shape index: {}]
  %s7 = inlined_call_operand.hbm [shape: bf16[32,32], index: 7, kind: input, shape index: {}]
  %s8 = inlined_call_operand.hbm [shape: f32[1,32], index: 8, kind: input, shape index: {}]
  %s9 = inlined_call_operand.hbm [shape: f32[1,32], index: 9, kind: input, shape index: {}]
  %s10 = inlined_call_operand.vmem [shape: f32[1,32], index: 10, kind: input, shape index: {}]
  %s11 = inlined_call_operand.vmem [shape: bf16[32,128], index: 11, kind: input, shape index: {}]
  %s12 = inlined_call_operand.vmem [shape: f32[1,128], index: 12, kind: input, shape index: {}]
  %s13 = inlined_call_operand.vmem [shape: bf16[128,32], index: 13, kind: input, shape index: {}]
  %s14 = inlined_call_operand.vmem [shape: f32[1,32], index: 14, kind: input, shape index: {}]
  %s15 = inlined_call_operand.vmem [shape: f32[1,32], index: 15, kind: input, shape index: {}]
  %s16 = inlined_call_operand.vmem [shape: f32[1,32], index: 16, kind: input, shape index: {}]
  %s17 = inlined_call_operand.hbm [shape: f32[2,16,32], index: 17, kind: output, shape index: {}]
  %s18 = sld [smem:[#allocation0]]
  $region136: #{tpu_custom_call.1} parent=0
    _
  %s20 = ssub.s32 1, %s18
  %s21 = scalar_select 0, %s20, %s18
  $region1: #{tpu_custom_call.1} parent=0
    #allocation4 [shape = 'u8[512]{0}', space=vmem, size = 0x400, scoped, tag = 'input window, operand 2, single buffered']
    #allocation5 [shape = 's32[2]{0}', space=sflag, size = 0x8, scoped, tag = 'scoped memory for tpu_custom_call.1']
    #allocation6 [shape = 's32[2]{0}', space=sflag, size = 0x8, scoped, tag = 'scoped memory for tpu_custom_call.1']
    #allocation7 [shape = 'u8[512]{0}', space=vmem, size = 0x400, scoped, tag = 'input window, operand 4, single buffered']
    #allocation8 [shape = 's32[1]{0}', space=sflag, size = 0x4, scoped, tag = 'scoped memory for tpu_custom_call.1']
    #allocation9 [shape = 'u8[512]{0}', space=vmem, size = 0x400, scoped, tag = 'input window, operand 6, single buffered']
    #allocation10 [shape = 'u8[8192]{0}', space=vmem, size = 0x2000, scoped, tag = 'input window, operand 7, single buffered']
    #allocation11 [shape = 's32[1]{0}', space=sflag, size = 0x4, scoped, tag = 'scoped memory for tpu_custom_call.1']
    #allocation12 [shape = 'u8[512]{0}', space=vmem, size = 0x400, scoped, tag = 'input window, operand 8, single buffered']
    #allocation13 [shape = 'u8[512]{0}', space=vmem, size = 0x400, scoped, tag = 'input window, operand 9, single buffered']
    #allocation14 [shape = 's32[1]{0}', space=sflag, size = 0x4, scoped, tag = 'scoped memory for tpu_custom_call.1']
    #allocation15 [shape = 'u8[8192]{0}', space=vmem, size = 0x2000, scoped, tag = 'output window, operand 0']
    %22 = vsyncpa [#allocation5], 0
    %23 = vsyncpa [#allocation8], 0
    %24 = vsyncpa [#allocation11], 0
    %25 = vsyncpa [#allocation14], 0
    %26 = vsyncpa [#allocation6], 0
    %s27 = scalar_lea.sflag [#allocation6], 1
    %28 = vsyncpa %s27, 0
    loop: start=0, step=1, limit=6
    $region2: #{tpu_custom_call.1} parent=1 // loop_pre_header
      _
    $region3: #{tpu_custom_call.1} parent=1 // loop_header
      %s30 = sphi 0, %s34
      %p31 = scmp.ge.s32.totalorder %s30, 6
      %s37 = sphi 0, %s49
      %s38 = sphi 0, %s45
      %s39 = sphi 0, %s37
      %s40 = sphi 0, %s38
      %s41 = sphi 0, %s39
      %s42 = sphi 0, %s40
      %s52 = sphi 0, %s54
      %s55 = sphi 0, %s52
      %s56 = sphi 0, %s55
      %s72 = sphi 0, %s56
      %s76 = sphi 0, %s76
      %s78 = sphi 0, %s76
      %s79 = sphi 0, %s78
      %s93 = sphi 0, %s79
      %s97 = sphi 0, %s97
      %s99 = sphi 0, %s97
      %s100 = sphi 0, %s99
      %s114 = sphi 0, %s100
      %s118 = sphi 0, %s118
      %s120 = sphi 0, %s118
      %s121 = sphi 0, %s120
      %s135 = sphi 0, %s121
      %s139 = sphi 0, %s139
      %s141 = sphi 0, %s139
      %s142 = sphi 0, %s141
      %s156 = sphi 0, %s142
      %s160 = sphi 0, %s160
      %s162 = sphi 0, %s160
      %s163 = sphi 0, %s162
      %s177 = sphi 0, %s163
      %s181 = sphi 0, %s181
      %s183 = sphi 0, %s181
      %s184 = sphi 0, %s183
      %s198 = sphi 0, %s184
      %s202 = sphi 0, %s202
      %s204 = sphi 0, %s202
      %s205 = sphi 0, %s204
      %s219 = sphi 0, %s205
      %s223 = sphi 0, %s223
      %s225 = sphi 0, %s223
      %s226 = sphi 0, %s225
      %s240 = sphi 0, %s226
      %s244 = sphi 0, %s244
      %s246 = sphi 0, %s244
      %s247 = sphi 0, %s246
      %s261 = sphi 0, %s247
      %s265 = sphi 0, %s265
      %s267 = sphi 0, %s265
      %s268 = sphi 0, %s267
      %s282 = sphi 0, %s268
      %s286 = sphi 0, %s286
      %s288 = sphi 0, %s286
      %s289 = sphi 0, %s288
      %s303 = sphi 0, %s289
      %s307 = sphi 0, %s307
      %s309 = sphi 0, %s307
      %s310 = sphi 0, %s309
      %s324 = sphi 0, %s310
      %s328 = sphi 0, %s328
      %s330 = sphi 0, %s328
      %s331 = sphi 0, %s330
      %s345 = sphi 0, %s331
      %s349 = sphi 0, %s349
      %s351 = sphi 0, %s349
      %s352 = sphi 0, %s351
      %s366 = sphi 0, %s352
      %s370 = sphi 0, %s370
      %s372 = sphi 0, %s370
      %s373 = sphi 0, %s372
      %s387 = sphi 0, %s373
      %s391 = sphi 0, %s391
      %s393 = sphi 0, %s391
      %s394 = sphi 0, %s393
      %s408 = sphi 0, %s394
      %s416 = sphi 0, %s418
      %s419 = sphi 0, %s416
      %s420 = sphi 0, %s419
      %s436 = sphi 0, %s420
    $region4: #{tpu_custom_call.1} parent=1 // loop_header_branch
      %33 = sbr.rel (%p31) target = $region8
    $region5: #{tpu_custom_call.1} parent=1 // loop_body
      %s35 = ssub.s32 %s30, 1
      %s36 = ssub.s32 %s30, 2
      %s43 = sadd.s32 1, %s38
      %p44 = scmp.ge.s32.totalorder %s43, 2
      %s45 = scalar_select %p44, 0, %s43
      %s46 = sadd.s32 1, %s37
      %s47 = scalar_select %p44, %s46, %s37
      %p48 = scmp.ge.s32.totalorder %s47, 2
      %s49 = scalar_select %p48, 0, %s47
      %s50 = ssub.s32 %s37, %s49
      %p51 = scmp.eq.s32.totalorder %s50, 0
      %s53 = sadd.s32 %s52, 1
      %s54 = scalar_select %p51, %s52, %s53
      %p57 = pneg %p51
      %p58 = scmp.eq.s32.totalorder %s30, 3
      %p59 = por %p57, %p58
      %p60 = scmp.ne.s32.totalorder %s52, %s55
      %p61 = scmp.eq.s32.totalorder %s30, 0
      %p62 = por %p60, %p61
      %p63 = scmp.ne.s32.totalorder %s52, %s55
      %p64 = scmp.eq.s32.totalorder %s35, 3
      %p65 = por %p63, %p64
      %p66 = scmp.ne.s32.totalorder %s55, %s56
      %p67 = scmp.eq.s32.totalorder %s35, 0
      %p68 = por %p66, %p67
      %p69 = scmp.ne.s32.totalorder %s55, %s56
      %p70 = scmp.eq.s32.totalorder %s36, 3
      %p71 = por %p69, %p70
      %p73 = scmp.ne.s32.totalorder %s56, %s72
      %p74 = scmp.eq.s32.totalorder %s36, 0
      %p75 = por %p73, %p74
      %s77 = sadd.s32 %s76, 1
      %p80 = scmp.eq.s32.totalorder %s30, 3
      %p81 = scmp.ne.s32.totalorder %s76, %s78
      %p82 = scmp.eq.s32.totalorder %s30, 0
      %p83 = por %p81, %p82
      %p84 = scmp.ne.s32.totalorder %s76, %s78
      %p85 = scmp.eq.s32.totalorder %s35, 3
      %p86 = por %p84, %p85
      %p87 = scmp.ne.s32.totalorder %s78, %s79
      %p88 = scmp.eq.s32.totalorder %s35, 0
      %p89 = por %p87, %p88
      %p90 = scmp.ne.s32.totalorder %s78, %s79
      %p91 = scmp.eq.s32.totalorder %s36, 3
      %p92 = por %p90, %p91
      %p94 = scmp.ne.s32.totalorder %s79, %s93
      %p95 = scmp.eq.s32.totalorder %s36, 0
      %p96 = por %p94, %p95
      %s98 = sadd.s32 %s97, 1
      %p101 = scmp.eq.s32.totalorder %s30, 3
      %p102 = scmp.ne.s32.totalorder %s97, %s99
      %p103 = scmp.eq.s32.totalorder %s30, 0
      %p104 = por %p102, %p103
      %p105 = scmp.ne.s32.totalorder %s97, %s99
      %p106 = scmp.eq.s32.totalorder %s35, 3
      %p107 = por %p105, %p106
      %p108 = scmp.ne.s32.totalorder %s99, %s100
      %p109 = scmp.eq.s32.totalorder %s35, 0
      %p110 = por %p108, %p109
      %p111 = scmp.ne.s32.totalorder %s99, %s100
      %p112 = scmp.eq.s32.totalorder %s36, 3
      %p113 = por %p111, %p112
      %p115 = scmp.ne.s32.totalorder %s100, %s114
      %p116 = scmp.eq.s32.totalorder %s36, 0
      %p117 = por %p115, %p116
      %s119 = sadd.s32 %s118, 1
      %p122 = scmp.eq.s32.totalorder %s30, 3
      %p123 = scmp.ne.s32.totalorder %s118, %s120
      %p124 = scmp.eq.s32.totalorder %s30, 0
      %p125 = por %p123, %p124
      %p126 = scmp.ne.s32.totalorder %s118, %s120
      %p127 = scmp.eq.s32.totalorder %s35, 3
      %p128 = por %p126, %p127
      %p129 = scmp.ne.s32.totalorder %s120, %s121
      %p130 = scmp.eq.s32.totalorder %s35, 0
      %p131 = por %p129, %p130
      %p132 = scmp.ne.s32.totalorder %s120, %s121
      %p133 = scmp.eq.s32.totalorder %s36, 3
      %p134 = por %p132, %p133
      %p136 = scmp.ne.s32.totalorder %s121, %s135
      %p137 = scmp.eq.s32.totalorder %s36, 0
      %p138 = por %p136, %p137
      %s140 = sadd.s32 %s139, 1
      %p143 = scmp.eq.s32.totalorder %s30, 3
      %p144 = scmp.ne.s32.totalorder %s139, %s141
      %p145 = scmp.eq.s32.totalorder %s30, 0
      %p146 = por %p144, %p145
      %p147 = scmp.ne.s32.totalorder %s139, %s141
      %p148 = scmp.eq.s32.totalorder %s35, 3
      %p149 = por %p147, %p148
      %p150 = scmp.ne.s32.totalorder %s141, %s142
      %p151 = scmp.eq.s32.totalorder %s35, 0
      %p152 = por %p150, %p151
      %p153 = scmp.ne.s32.totalorder %s141, %s142
      %p154 = scmp.eq.s32.totalorder %s36, 3
      %p155 = por %p153, %p154
      %p157 = scmp.ne.s32.totalorder %s142, %s156
      %p158 = scmp.eq.s32.totalorder %s36, 0
      %p159 = por %p157, %p158
      %s161 = sadd.s32 %s160, 1
      %p164 = scmp.eq.s32.totalorder %s30, 3
      %p165 = scmp.ne.s32.totalorder %s160, %s162
      %p166 = scmp.eq.s32.totalorder %s30, 0
      %p167 = por %p165, %p166
      %p168 = scmp.ne.s32.totalorder %s160, %s162
      %p169 = scmp.eq.s32.totalorder %s35, 3
      %p170 = por %p168, %p169
      %p171 = scmp.ne.s32.totalorder %s162, %s163
      %p172 = scmp.eq.s32.totalorder %s35, 0
      %p173 = por %p171, %p172
      %p174 = scmp.ne.s32.totalorder %s162, %s163
      %p175 = scmp.eq.s32.totalorder %s36, 3
      %p176 = por %p174, %p175
      %p178 = scmp.ne.s32.totalorder %s163, %s177
      %p179 = scmp.eq.s32.totalorder %s36, 0
      %p180 = por %p178, %p179
      %s182 = sadd.s32 %s181, 1
      %p185 = scmp.eq.s32.totalorder %s30, 3
      %p186 = scmp.ne.s32.totalorder %s181, %s183
      %p187 = scmp.eq.s32.totalorder %s30, 0
      %p188 = por %p186, %p187
      %p189 = scmp.ne.s32.totalorder %s181, %s183
      %p190 = scmp.eq.s32.totalorder %s35, 3
      %p191 = por %p189, %p190
      %p192 = scmp.ne.s32.totalorder %s183, %s184
      %p193 = scmp.eq.s32.totalorder %s35, 0
      %p194 = por %p192, %p193
      %p195 = scmp.ne.s32.totalorder %s183, %s184
      %p196 = scmp.eq.s32.totalorder %s36, 3
      %p197 = por %p195, %p196
      %p199 = scmp.ne.s32.totalorder %s184, %s198
      %p200 = scmp.eq.s32.totalorder %s36, 0
      %p201 = por %p199, %p200
      %s203 = sadd.s32 %s202, 1
      %p206 = scmp.eq.s32.totalorder %s30, 3
      %p207 = scmp.ne.s32.totalorder %s202, %s204
      %p208 = scmp.eq.s32.totalorder %s30, 0
      %p209 = por %p207, %p208
      %p210 = scmp.ne.s32.totalorder %s202, %s204
      %p211 = scmp.eq.s32.totalorder %s35, 3
      %p212 = por %p210, %p211
      %p213 = scmp.ne.s32.totalorder %s204, %s205
      %p214 = scmp.eq.s32.totalorder %s35, 0
      %p215 = por %p213, %p214
      %p216 = scmp.ne.s32.totalorder %s204, %s205
      %p217 = scmp.eq.s32.totalorder %s36, 3
      %p218 = por %p216, %p217
      %p220 = scmp.ne.s32.totalorder %s205, %s219
      %p221 = scmp.eq.s32.totalorder %s36, 0
      %p222 = por %p220, %p221
      %s224 = sadd.s32 %s223, 1
      %p227 = scmp.eq.s32.totalorder %s30, 3
      %p228 = scmp.ne.s32.totalorder %s223, %s225
      %p229 = scmp.eq.s32.totalorder %s30, 0
      %p230 = por %p228, %p229
      %p231 = scmp.ne.s32.totalorder %s223, %s225
      %p232 = scmp.eq.s32.totalorder %s35, 3
      %p233 = por %p231, %p232
      %p234 = scmp.ne.s32.totalorder %s225, %s226
      %p235 = scmp.eq.s32.totalorder %s35, 0
      %p236 = por %p234, %p235
      %p237 = scmp.ne.s32.totalorder %s225, %s226
      %p238 = scmp.eq.s32.totalorder %s36, 3
      %p239 = por %p237, %p238
      %p241 = scmp.ne.s32.totalorder %s226, %s240
      %p242 = scmp.eq.s32.totalorder %s36, 0
      %p243 = por %p241, %p242
      %s245 = sadd.s32 %s244, 1
      %p248 = scmp.eq.s32.totalorder %s30, 3
      %p249 = scmp.ne.s32.totalorder %s244, %s246
      %p250 = scmp.eq.s32.totalorder %s30, 0
      %p251 = por %p249, %p250
      %p252 = scmp.ne.s32.totalorder %s244, %s246
      %p253 = scmp.eq.s32.totalorder %s35, 3
      %p254 = por %p252, %p253
      %p255 = scmp.ne.s32.totalorder %s246, %s247
      %p256 = scmp.eq.s32.totalorder %s35, 0
      %p257 = por %p255, %p256
      %p258 = scmp.ne.s32.totalorder %s246, %s247
      %p259 = scmp.eq.s32.totalorder %s36, 3
      %p260 = por %p258, %p259
      %p262 = scmp.ne.s32.totalorder %s247, %s261
      %p263 = scmp.eq.s32.totalorder %s36, 0
      %p264 = por %p262, %p263
      %s266 = sadd.s32 %s265, 1
      %p269 = scmp.eq.s32.totalorder %s30, 3
      %p270 = scmp.ne.s32.totalorder %s265, %s267
      %p271 = scmp.eq.s32.totalorder %s30, 0
      %p272 = por %p270, %p271
      %p273 = scmp.ne.s32.totalorder %s265, %s267
      %p274 = scmp.eq.s32.totalorder %s35, 3
      %p275 = por %p273, %p274
      %p276 = scmp.ne.s32.totalorder %s267, %s268
      %p277 = scmp.eq.s32.totalorder %s35, 0
      %p278 = por %p276, %p277
      %p279 = scmp.ne.s32.totalorder %s267, %s268
      %p280 = scmp.eq.s32.totalorder %s36, 3
      %p281 = por %p279, %p280
      %p283 = scmp.ne.s32.totalorder %s268, %s282
      %p284 = scmp.eq.s32.totalorder %s36, 0
      %p285 = por %p283, %p284
      %s287 = sadd.s32 %s286, 1
      %p290 = scmp.eq.s32.totalorder %s30, 3
      %p291 = scmp.ne.s32.totalorder %s286, %s288
      %p292 = scmp.eq.s32.totalorder %s30, 0
      %p293 = por %p291, %p292
      %p294 = scmp.ne.s32.totalorder %s286, %s288
      %p295 = scmp.eq.s32.totalorder %s35, 3
      %p296 = por %p294, %p295
      %p297 = scmp.ne.s32.totalorder %s288, %s289
      %p298 = scmp.eq.s32.totalorder %s35, 0
      %p299 = por %p297, %p298
      %p300 = scmp.ne.s32.totalorder %s288, %s289
      %p301 = scmp.eq.s32.totalorder %s36, 3
      %p302 = por %p300, %p301
      %p304 = scmp.ne.s32.totalorder %s289, %s303
      %p305 = scmp.eq.s32.totalorder %s36, 0
      %p306 = por %p304, %p305
      %s308 = sadd.s32 %s307, 1
      %p311 = scmp.eq.s32.totalorder %s30, 3
      %p312 = scmp.ne.s32.totalorder %s307, %s309
      %p313 = scmp.eq.s32.totalorder %s30, 0
      %p314 = por %p312, %p313
      %p315 = scmp.ne.s32.totalorder %s307, %s309
      %p316 = scmp.eq.s32.totalorder %s35, 3
      %p317 = por %p315, %p316
      %p318 = scmp.ne.s32.totalorder %s309, %s310
      %p319 = scmp.eq.s32.totalorder %s35, 0
      %p320 = por %p318, %p319
      %p321 = scmp.ne.s32.totalorder %s309, %s310
      %p322 = scmp.eq.s32.totalorder %s36, 3
      %p323 = por %p321, %p322
      %p325 = scmp.ne.s32.totalorder %s310, %s324
      %p326 = scmp.eq.s32.totalorder %s36, 0
      %p327 = por %p325, %p326
      %s329 = sadd.s32 %s328, 1
      %p332 = scmp.eq.s32.totalorder %s30, 3
      %p333 = scmp.ne.s32.totalorder %s328, %s330
      %p334 = scmp.eq.s32.totalorder %s30, 0
      %p335 = por %p333, %p334
      %p336 = scmp.ne.s32.totalorder %s328, %s330
      %p337 = scmp.eq.s32.totalorder %s35, 3
      %p338 = por %p336, %p337
      %p339 = scmp.ne.s32.totalorder %s330, %s331
      %p340 = scmp.eq.s32.totalorder %s35, 0
      %p341 = por %p339, %p340
      %p342 = scmp.ne.s32.totalorder %s330, %s331
      %p343 = scmp.eq.s32.totalorder %s36, 3
      %p344 = por %p342, %p343
      %p346 = scmp.ne.s32.totalorder %s331, %s345
      %p347 = scmp.eq.s32.totalorder %s36, 0
      %p348 = por %p346, %p347
      %s350 = sadd.s32 %s349, 1
      %p353 = scmp.eq.s32.totalorder %s30, 3
      %p354 = scmp.ne.s32.totalorder %s349, %s351
      %p355 = scmp.eq.s32.totalorder %s30, 0
      %p356 = por %p354, %p355
      %p357 = scmp.ne.s32.totalorder %s349, %s351
      %p358 = scmp.eq.s32.totalorder %s35, 3
      %p359 = por %p357, %p358
      %p360 = scmp.ne.s32.totalorder %s351, %s352
      %p361 = scmp.eq.s32.totalorder %s35, 0
      %p362 = por %p360, %p361
      %p363 = scmp.ne.s32.totalorder %s351, %s352
      %p364 = scmp.eq.s32.totalorder %s36, 3
      %p365 = por %p363, %p364
      %p367 = scmp.ne.s32.totalorder %s352, %s366
      %p368 = scmp.eq.s32.totalorder %s36, 0
      %p369 = por %p367, %p368
      %s371 = sadd.s32 %s370, 1
      %p374 = scmp.eq.s32.totalorder %s30, 3
      %p375 = scmp.ne.s32.totalorder %s370, %s372
      %p376 = scmp.eq.s32.totalorder %s30, 0
      %p377 = por %p375, %p376
      %p378 = scmp.ne.s32.totalorder %s370, %s372
      %p379 = scmp.eq.s32.totalorder %s35, 3
      %p380 = por %p378, %p379
      %p381 = scmp.ne.s32.totalorder %s372, %s373
      %p382 = scmp.eq.s32.totalorder %s35, 0
      %p383 = por %p381, %p382
      %p384 = scmp.ne.s32.totalorder %s372, %s373
      %p385 = scmp.eq.s32.totalorder %s36, 3
      %p386 = por %p384, %p385
      %p388 = scmp.ne.s32.totalorder %s373, %s387
      %p389 = scmp.eq.s32.totalorder %s36, 0
      %p390 = por %p388, %p389
      %s392 = sadd.s32 %s391, 1
      %p395 = scmp.eq.s32.totalorder %s30, 3
      %p396 = scmp.ne.s32.totalorder %s391, %s393
      %p397 = scmp.eq.s32.totalorder %s30, 0
      %p398 = por %p396, %p397
      %p399 = scmp.ne.s32.totalorder %s391, %s393
      %p400 = scmp.eq.s32.totalorder %s35, 3
      %p401 = por %p399, %p400
      %p402 = scmp.ne.s32.totalorder %s393, %s394
      %p403 = scmp.eq.s32.totalorder %s35, 0
      %p404 = por %p402, %p403
      %p405 = scmp.ne.s32.totalorder %s393, %s394
      %p406 = scmp.eq.s32.totalorder %s36, 3
      %p407 = por %p405, %p406
      %p409 = scmp.ne.s32.totalorder %s394, %s408
      %p410 = scmp.eq.s32.totalorder %s36, 0
      %p411 = por %p409, %p410
      %s412 = ssub.s32 %s37, %s49
      %s413 = ssub.s32 %s38, %s45
      %s414 = sor.u32 %s412, %s413
      %p415 = scmp.eq.s32.totalorder %s414, 0
      %s417 = sadd.s32 %s416, 1
      %s418 = scalar_select %p415, %s416, %s417
      %p421 = pneg %p415
      %p422 = scmp.eq.s32.totalorder %s30, 3
      %p423 = por %p421, %p422
      %p424 = scmp.ne.s32.totalorder %s416, %s419
      %p425 = scmp.eq.s32.totalorder %s30, 0
      %p426 = por %p424, %p425
      %p427 = scmp.ne.s32.totalorder %s416, %s419
      %p428 = scmp.eq.s32.totalorder %s35, 3
      %p429 = por %p427, %p428
      %p430 = scmp.ne.s32.totalorder %s419, %s420
      %p431 = scmp.eq.s32.totalorder %s35, 0
      %p432 = por %p430, %p431
      %p433 = scmp.ne.s32.totalorder %s419, %s420
      %p434 = scmp.eq.s32.totalorder %s36, 3
      %p435 = por %p433, %p434
      %p437 = scmp.ne.s32.totalorder %s420, %s436
      %p438 = scmp.eq.s32.totalorder %s36, 0
      %p439 = por %p437, %p438
      %p440 = scmp.le.s32.totalorder 1, %s30
      %p441 = scmp.lt.s32.totalorder %s30, 5
      %p442 = pnand %p440, %p441
      %p443 = pneg %p442
      // Predicated region
      $region9: #{tpu_custom_call.1} parent=5 // pred_check
        _
      $region10: #{tpu_custom_call.1} parent=5 // pred_check_branch
        %445 = sbr.rel (%p442) target = $region12
      $region11: #{tpu_custom_call.1} parent=5 // pred_region
        %s446 = ssub.s32 %s30, 1
        // Predicated region
        $region13: #{tpu_custom_call.1} parent=11 // pred_check
          %p447 = pneg %p89
        $region14: #{tpu_custom_call.1} parent=11 // pred_check_branch
          %449 = sbr.rel (%p447) target = $region16
        $region15: #{tpu_custom_call.1} parent=11 // pred_region
          _
        $region16: #{tpu_custom_call.1} parent=11 // pred_fallthru
          _
        // Predicated region
        $region17: #{tpu_custom_call.1} parent=11 // pred_check
          %p450 = pneg %p110
        $region18: #{tpu_custom_call.1} parent=11 // pred_check_branch
          %452 = sbr.rel (%p450) target = $region20
        $region19: #{tpu_custom_call.1} parent=11 // pred_region
          %s454 = ssub.s32 16, 16
          %455 = vsyncadd [#allocation5], %s454
          %s457 = sshll.u32 [#allocation4], 4
          %s458 = int_to_ptr.vmem [resolvable:$true] %s457
          %460 = dma.hbm_to_vmem [thread:$0]  %s2, 16, %s458, [#allocation5]
        $region20: #{tpu_custom_call.1} parent=11 // pred_fallthru
          _
        // Predicated region
        $region21: #{tpu_custom_call.1} parent=11 // pred_check
          %p461 = pneg %p131
        $region22: #{tpu_custom_call.1} parent=11 // pred_check_branch
          %463 = sbr.rel (%p461) target = $region24
        $region23: #{tpu_custom_call.1} parent=11 // pred_region
          _
        $region24: #{tpu_custom_call.1} parent=11 // pred_fallthru
          _
        // Predicated region
        $region25: #{tpu_custom_call.1} parent=11 // pred_check
          %p464 = pneg %p152
        $region26: #{tpu_custom_call.1} parent=11 // pred_check_branch
          %466 = sbr.rel (%p464) target = $region28
        $region27: #{tpu_custom_call.1} parent=11 // pred_region
          %s468 = ssub.s32 16, 16
          %469 = vsyncadd [#allocation8], %s468
          %s471 = sshll.u32 [#allocation7], 4
          %s472 = int_to_ptr.vmem [resolvable:$true] %s471
          %474 = dma.hbm_to_vmem [thread:$0]  %s4, 16, %s472, [#allocation8]
        $region28: #{tpu_custom_call.1} parent=11 // pred_fallthru
          _
        // Predicated region
        $region29: #{tpu_custom_call.1} parent=11 // pred_check
          %p475 = pneg %p173
        $region30: #{tpu_custom_call.1} parent=11 // pred_check_branch
          %477 = sbr.rel (%p475) target = $region32
        $region31: #{tpu_custom_call.1} parent=11 // pred_region
          _
        $region32: #{tpu_custom_call.1} parent=11 // pred_fallthru
          _
        // Predicated region
        $region33: #{tpu_custom_call.1} parent=11 // pred_check
          %p478 = pneg %p194
        $region34: #{tpu_custom_call.1} parent=11 // pred_check_branch
          %480 = sbr.rel (%p478) target = $region36
        $region35: #{tpu_custom_call.1} parent=11 // pred_region
          %s482 = ssub.s32 16, 16
          %483 = vsyncadd [#allocation8], %s482
          %s485 = sshll.u32 [#allocation9], 4
          %s486 = int_to_ptr.vmem [resolvable:$true] %s485
          %488 = dma.hbm_to_vmem [thread:$0]  %s6, 16, %s486, [#allocation8]
        $region36: #{tpu_custom_call.1} parent=11 // pred_fallthru
          _
        // Predicated region
        $region37: #{tpu_custom_call.1} parent=11 // pred_check
          %p489 = pneg %p215
        $region38: #{tpu_custom_call.1} parent=11 // pred_check_branch
          %491 = sbr.rel (%p489) target = $region40
        $region39: #{tpu_custom_call.1} parent=11 // pred_region
          %s493 = ssub.s32 256, 256
          %494 = vsyncadd [#allocation11], %s493
          %s495 = sshll.u32 [#allocation10], 4
          %s496 = int_to_ptr.vmem [resolvable:$true] %s495
          %501 = dma.hbm_to_vmem [thread:$0]  %s7, 256, %s496, [#allocation11], 64, 64, 4
        $region40: #{tpu_custom_call.1} parent=11 // pred_fallthru
          _
        // Predicated region
        $region41: #{tpu_custom_call.1} parent=11 // pred_check
          %p502 = pneg %p236
        $region42: #{tpu_custom_call.1} parent=11 // pred_check_branch
          %504 = sbr.rel (%p502) target = $region44
        $region43: #{tpu_custom_call.1} parent=11 // pred_region
          %s506 = ssub.s32 16, 16
          %507 = vsyncadd [#allocation11], %s506
          %s509 = sshll.u32 [#allocation12], 4
          %s510 = int_to_ptr.vmem [resolvable:$true] %s509
          %512 = dma.hbm_to_vmem [thread:$0]  %s8, 16, %s510, [#allocation11]
        $region44: #{tpu_custom_call.1} parent=11 // pred_fallthru
          _
        // Predicated region
        $region45: #{tpu_custom_call.1} parent=11 // pred_check
          %p513 = pneg %p257
        $region46: #{tpu_custom_call.1} parent=11 // pred_check_branch
          %515 = sbr.rel (%p513) target = $region48
        $region47: #{tpu_custom_call.1} parent=11 // pred_region
          %s517 = ssub.s32 16, 16
          %518 = vsyncadd [#allocation14], %s517
          %s520 = sshll.u32 [#allocation13], 4
          %s521 = int_to_ptr.vmem [resolvable:$true] %s520
          %523 = dma.hbm_to_vmem [thread:$0]  %s9, 16, %s521, [#allocation14]
        $region48: #{tpu_custom_call.1} parent=11 // pred_fallthru
          _
        // Predicated region
        $region49: #{tpu_custom_call.1} parent=11 // pred_check
          %p524 = pneg %p278
        $region50: #{tpu_custom_call.1} parent=11 // pred_check_branch
          %526 = sbr.rel (%p524) target = $region52
        $region51: #{tpu_custom_call.1} parent=11 // pred_region
          _
        $region52: #{tpu_custom_call.1} parent=11 // pred_fallthru
          _
        // Predicated region
        $region53: #{tpu_custom_call.1} parent=11 // pred_check
          %p527 = pneg %p299
        $region54: #{tpu_custom_call.1} parent=11 // pred_check_branch
          %529 = sbr.rel (%p527) target = $region56
        $region55: #{tpu_custom_call.1} parent=11 // pred_region
          _
        $region56: #{tpu_custom_call.1} parent=11 // pred_fallthru
          _
        // Predicated region
        $region57: #{tpu_custom_call.1} parent=11 // pred_check
          %p530 = pneg %p320
        $region58: #{tpu_custom_call.1} parent=11 // pred_check_branch
          %532 = sbr.rel (%p530) target = $region60
        $region59: #{tpu_custom_call.1} parent=11 // pred_region
          _
        $region60: #{tpu_custom_call.1} parent=11 // pred_fallthru
          _
        // Predicated region
        $region61: #{tpu_custom_call.1} parent=11 // pred_check
          %p533 = pneg %p341
        $region62: #{tpu_custom_call.1} parent=11 // pred_check_branch
          %535 = sbr.rel (%p533) target = $region64
        $region63: #{tpu_custom_call.1} parent=11 // pred_region
          _
        $region64: #{tpu_custom_call.1} parent=11 // pred_fallthru
          _
        // Predicated region
        $region65: #{tpu_custom_call.1} parent=11 // pred_check
          %p536 = pneg %p362
        $region66: #{tpu_custom_call.1} parent=11 // pred_check_branch
          %538 = sbr.rel (%p536) target = $region68
        $region67: #{tpu_custom_call.1} parent=11 // pred_region
          _
        $region68: #{tpu_custom_call.1} parent=11 // pred_fallthru
          _
        // Predicated region
        $region69: #{tpu_custom_call.1} parent=11 // pred_check
          %p539 = pneg %p383
        $region70: #{tpu_custom_call.1} parent=11 // pred_check_branch
          %541 = sbr.rel (%p539) target = $region72
        $region71: #{tpu_custom_call.1} parent=11 // pred_region
          _
        $region72: #{tpu_custom_call.1} parent=11 // pred_fallthru
          _
        // Predicated region
        $region73: #{tpu_custom_call.1} parent=11 // pred_check
          %p542 = pneg %p404
        $region74: #{tpu_custom_call.1} parent=11 // pred_check_branch
          %544 = sbr.rel (%p542) target = $region76
        $region75: #{tpu_custom_call.1} parent=11 // pred_region
          _
        $region76: #{tpu_custom_call.1} parent=11 // pred_fallthru
          _
      $region12: #{tpu_custom_call.1} parent=5 // pred_fallthru
        _
      %p545 = scmp.lt.s32.totalorder %s30, 4
      // Predicated region
      $region77: #{tpu_custom_call.1} parent=5 // pred_check
        %p546 = pneg %p545
      $region78: #{tpu_custom_call.1} parent=5 // pred_check_branch
        %548 = sbr.rel (%p546) target = $region80
      $region79: #{tpu_custom_call.1} parent=5 // pred_region
        // Predicated region
        $region81: #{tpu_custom_call.1} parent=79 // pred_check
          %p549 = pneg %p62
        $region82: #{tpu_custom_call.1} parent=79 // pred_check_branch
          %551 = sbr.rel (%p549) target = $region84
        $region83: #{tpu_custom_call.1} parent=79 // pred_region
          %p552 = scmp.lt.s32.totalorder %s37, 1
          %s553 = scalar_select %p552, %s37, 1
          %s554 = smul.addr %s553, 2
          %s555 = smul.addr %s554, 8
          %s556 = scalar_lea.vmem %s0, %s555
        $region84: #{tpu_custom_call.1} parent=79 // pred_fallthru
          _
      $region80: #{tpu_custom_call.1} parent=5 // pred_fallthru
        _
      %p557 = scmp.le.s32.totalorder 1, %s30
      %p558 = scmp.lt.s32.totalorder %s30, 5
      %p559 = pnand %p557, %p558
      %p560 = pneg %p559
      // Predicated region
      $region85: #{tpu_custom_call.1} parent=5 // pred_check
        _
      $region86: #{tpu_custom_call.1} parent=5 // pred_check_branch
        %562 = sbr.rel (%p559) target = $region88
      $region87: #{tpu_custom_call.1} parent=5 // pred_region
        %s563 = ssub.s32 %s30, 1
        // Predicated region
        $region89: #{tpu_custom_call.1} parent=87 // pred_check
          %p564 = pneg %p110
        $region90: #{tpu_custom_call.1} parent=87 // pred_check_branch
          %566 = sbr.rel (%p564) target = $region92
        $region91: #{tpu_custom_call.1} parent=87 // pred_region
          %567 = dma.done [#allocation5], 16
        $region92: #{tpu_custom_call.1} parent=87 // pred_fallthru
          _
        // Predicated region
        $region93: #{tpu_custom_call.1} parent=87 // pred_check
          %p568 = pneg %p152
        $region94: #{tpu_custom_call.1} parent=87 // pred_check_branch
          %570 = sbr.rel (%p568) target = $region96
        $region95: #{tpu_custom_call.1} parent=87 // pred_region
          %571 = dma.done [#allocation8], 16
        $region96: #{tpu_custom_call.1} parent=87 // pred_fallthru
          _
        // Predicated region
        $region97: #{tpu_custom_call.1} parent=87 // pred_check
          %p572 = pneg %p194
        $region98: #{tpu_custom_call.1} parent=87 // pred_check_branch
          %574 = sbr.rel (%p572) target = $region100
        $region99: #{tpu_custom_call.1} parent=87 // pred_region
          %575 = dma.done [#allocation8], 16
        $region100: #{tpu_custom_call.1} parent=87 // pred_fallthru
          _
        // Predicated region
        $region101: #{tpu_custom_call.1} parent=87 // pred_check
          %p576 = pneg %p215
        $region102: #{tpu_custom_call.1} parent=87 // pred_check_branch
          %578 = sbr.rel (%p576) target = $region104
        $region103: #{tpu_custom_call.1} parent=87 // pred_region
          %579 = dma.done [#allocation11], 256
        $region104: #{tpu_custom_call.1} parent=87 // pred_fallthru
          _
        // Predicated region
        $region105: #{tpu_custom_call.1} parent=87 // pred_check
          %p580 = pneg %p236
        $region106: #{tpu_custom_call.1} parent=87 // pred_check_branch
          %582 = sbr.rel (%p580) target = $region108
        $region107: #{tpu_custom_call.1} parent=87 // pred_region
          %583 = dma.done [#allocation11], 16
        $region108: #{tpu_custom_call.1} parent=87 // pred_fallthru
          _
        // Predicated region
        $region109: #{tpu_custom_call.1} parent=87 // pred_check
          %p584 = pneg %p257
        $region110: #{tpu_custom_call.1} parent=87 // pred_check_branch
          %586 = sbr.rel (%p584) target = $region112
        $region111: #{tpu_custom_call.1} parent=87 // pred_region
          %587 = dma.done [#allocation14], 16
        $region112: #{tpu_custom_call.1} parent=87 // pred_fallthru
          _
        %p588 = scmp.lt.s32.totalorder %s39, 1
        %s589 = scalar_select %p588, %s39, 1
        %s590 = smul.addr %s589, 2
        %s591 = smul.addr %s590, 8
        %s592 = scalar_lea.vmem %s0, %s591
        %p593 = pneg %p68
        %p594 = pneg %p65
        %p595 = pneg %p89
        %p596 = pneg %p86
        %p597 = pneg %p110
        %p598 = pneg %p107
        %p599 = pneg %p131
        %p600 = pneg %p128
        %p601 = pneg %p152
        %p602 = pneg %p149
        %p603 = pneg %p173
        %p604 = pneg %p170
        %p605 = pneg %p194
        %p606 = pneg %p191
        %p607 = pneg %p215
        %p608 = pneg %p212
        %p609 = pneg %p236
        %p610 = pneg %p233
        %p611 = pneg %p257
        %p612 = pneg %p254
        %p613 = pneg %p278
        %p614 = pneg %p275
        %p615 = pneg %p299
        %p616 = pneg %p296
        %p617 = pneg %p320
        %p618 = pneg %p317
        %p619 = pneg %p341
        %p620 = pneg %p338
        %p621 = pneg %p362
        %p622 = pneg %p359
        %p623 = pneg %p383
        %p624 = pneg %p380
        %p625 = pneg %p404
        %p626 = pneg %p401
        %p627 = pneg %p432
        %p628 = pneg %p429
        %s629 = sand.u32 %s419, 1
        %s630 = scalar_lea.sflag [#allocation6], %s629
        %s631 = sand.u32 %s419, 1
        %s632 = smul.addr %s631, 8
        %s633 = scalar_lea.vmem [#allocation15], %s632
        %p634 = scmp.lt.s32.totalorder %s39, 1
        %s635 = scalar_select %p634, %s39, 1
        %s636 = smul.addr %s635, 2
        %s637 = smul.addr %s636, 8
        %s638 = scalar_lea.vmem %s0, %s637
        %p640 = scmp.eq.s32.totalorder %s40, 0
        // Predicated region
        $region113: #{tpu_custom_call.1} parent=87 // pred_check
          %p641 = pneg %p640
        $region114: #{tpu_custom_call.1} parent=87 // pred_check_branch
          %643 = sbr.rel (%p641) target = $region116
        $region115: #{tpu_custom_call.1} parent=87 // pred_region
          %v644 = vld [vmem:[%s638] sm:$0xff]
          %v645 = vld [vmem:[%s638 + $0x8] sm:$0xff]
          %v646 = vpack.c.bf16 %v645, %v644
          %v647 = vld [vmem:[%s3] sm:$0xf]
          %v648 = vld [vmem:[%s3 + $0x4] sm:$0xf]
          %v649 = vld [vmem:[%s3 + $0x8] sm:$0xf]
          %v650 = vld [vmem:[%s3 + $0xc] sm:$0xf]
          %v651 = vld [vmem:[#allocation7] sm:$0x1]
          %v653 = vlaneseq
          %v654 = vshrl.u32 %v653, 7
          %v655 = vsub.s32 0, %v654
          %v656 = vrot.slane %v651, %v655
          %v662 = vunpack.c.l.b16 %v647
          %v663 = vunpack.c.l.b16 %v648
          %v664 = vunpack.c.l.b16 %v649
          %v665 = vunpack.c.l.b16 %v650
          %v666 = vpack.c.b16 %v663, %v662
          %v667 = vpack.c.b16 %v665, %v664
          %vm670 = vcmask 261120
          %v672 = vsel %vm670, %v646, 0
          %674 = vmatprep.subr.bf16.mxu0 0
          %675 = vmatpush1.bf16.msra.mxu0 0
          %676 = vmatprep.subr.bf16.mxu0 0
          %677 = vmatpush1.bf16.msra.mxu0 0
          %678 = vmatprep.subr.bf16.mxu0 0
          %679 = vmatpush1.bf16.msra.mxu0 0
          %680 = vmatprep.subr.bf16.mxu0 0
          %681 = vmatpush1.bf16.msra.mxu0 0
          %682 = vmatprep.subr.bf16.mxu0 0
          %683 = vmatpush1.bf16.msra.mxu0 0
          %684 = vmatprep.subr.bf16.mxu0 0
          %685 = vmatpush1.bf16.msra.mxu0 0
          %686 = vmatprep.subr.bf16.mxu0 0
          %687 = vmatpush1.bf16.msra.mxu0 %v667
          %688 = vmatprep.subr.bf16.mxu0 0
          %689 = vmatpush1.bf16.msra.mxu0 %v666
          %690 = vmatprep.subr.bf16.mxu0 0
          %691 = vmatpush2.bf16.msra.mxu0 0
          %692 = vmatprep.subr.bf16.mxu0 0
          %693 = vmatpush2.bf16.msra.mxu0 0
          %694 = vmatprep.subr.bf16.mxu0 0
          %695 = vmatpush2.bf16.msra.mxu0 0
          %696 = vmatprep.subr.bf16.mxu0 0
          %697 = vmatpush2.bf16.msra.mxu0 0
          %698 = vmatprep.subr.bf16.mxu0 0
          %699 = vmatpush2.bf16.msra.mxu0 0
          %700 = vmatprep.subr.bf16.mxu0 0
          %701 = vmatpush2.bf16.msra.mxu0 0
          %702 = vmatprep.subr.bf16.mxu0 0
          %703 = vmatpush2.bf16.msra.mxu0 0
          %704 = vmatprep.subr.bf16.mxu0 0
          %705 = vmatpush2.bf16.msra.mxu0 0
          %706 = vmatprep.mubr.bf16.mxu0 0
          %707 = vmatmul.mubr.bf16.gmra.mxu0 %v672
          %v708 = vpop.f32.mrf.mxu0
          %v709 = vadd.f32 %v656, %v708
          %v710 = vpop.f32.mrf.mxu0
          %v711 = vpop.f32.mrf.mxu0
          %v712 = vadd.f32 %v656, %v711
          %v713 = vpop.f32.mrf.mxu0
          %714 = vdwg.mxu0
          %v715 = vld [vmem:[%s5] sm:$0xf]
          %v716 = vld [vmem:[%s5 + $0x4] sm:$0xf]
          %v717 = vld [vmem:[%s5 + $0x8] sm:$0xf]
          %v718 = vld [vmem:[%s5 + $0xc] sm:$0xf]
          %v719 = vld [vmem:[#allocation9] sm:$0x1]
          %v721 = vlaneseq
          %v722 = vshrl.u32 %v721, 7
          %v723 = vsub.s32 0, %v722
          %v724 = vrot.slane %v719, %v723
          %v730 = vunpack.c.l.b16 %v715
          %v731 = vunpack.c.l.b16 %v716
          %v732 = vunpack.c.l.b16 %v717
          %v733 = vunpack.c.l.b16 %v718
          %v734 = vpack.c.b16 %v731, %v730
          %v735 = vpack.c.b16 %v733, %v732
          %738 = vmatprep.subr.bf16.mxu0 0
          %739 = vmatpush1.bf16.msra.mxu0 0
          %740 = vmatprep.subr.bf16.mxu0 0
          %741 = vmatpush1.bf16.msra.mxu0 0
          %742 = vmatprep.subr.bf16.mxu0 0
          %743 = vmatpush1.bf16.msra.mxu0 0
          %744 = vmatprep.subr.bf16.mxu0 0
          %745 = vmatpush1.bf16.msra.mxu0 0
          %746 = vmatprep.subr.bf16.mxu0 0
          %747 = vmatpush1.bf16.msra.mxu0 0
          %748 = vmatprep.subr.bf16.mxu0 0
          %749 = vmatpush1.bf16.msra.mxu0 0
          %750 = vmatprep.subr.bf16.mxu0 0
          %751 = vmatpush1.bf16.msra.mxu0 %v735
          %752 = vmatprep.subr.bf16.mxu0 0
          %753 = vmatpush1.bf16.msra.mxu0 %v734
          %754 = vmatprep.subr.bf16.mxu0 0
          %755 = vmatpush2.bf16.msra.mxu0 0
          %756 = vmatprep.subr.bf16.mxu0 0
          %757 = vmatpush2.bf16.msra.mxu0 0
          %758 = vmatprep.subr.bf16.mxu0 0
          %759 = vmatpush2.bf16.msra.mxu0 0
          %760 = vmatprep.subr.bf16.mxu0 0
          %761 = vmatpush2.bf16.msra.mxu0 0
          %762 = vmatprep.subr.bf16.mxu0 0
          %763 = vmatpush2.bf16.msra.mxu0 0
          %764 = vmatprep.subr.bf16.mxu0 0
          %765 = vmatpush2.bf16.msra.mxu0 0
          %766 = vmatprep.subr.bf16.mxu0 0
          %767 = vmatpush2.bf16.msra.mxu0 0
          %768 = vmatprep.subr.bf16.mxu0 0
          %769 = vmatpush2.bf16.msra.mxu0 0
          %770 = vmatprep.mubr.bf16.mxu0 0
          %771 = vmatmul.mubr.bf16.gmra.mxu0 %v672
          %v772 = vpop.f32.mrf.mxu0
          %v773 = vadd.f32 %v724, %v772
          %v774 = vpop.f32.mrf.mxu0
          %v775 = vpop.f32.mrf.mxu0
          %v776 = vadd.f32 %v724, %v775
          %v777 = vpop.f32.mrf.mxu0
          %778 = vdwg.mxu0
          %v779 = vpack.c.bf16 %v712, %v709
          %v781 = vunpack.c.l.b16 %v779
          %v782 = vunpack.c.h.b16 %v779
          %v783 = vpack.c.b16 %v781, %v781
          %v784 = vpack.c.b16 %v782, %v782
          %vm787 = vcmask 125952
          %788 = vst.msk [vmem:[#allocation2] sm:$0xf] %vm787, %v783
          %789 = vst.msk [vmem:[#allocation2 + $0x4] sm:$0xf] %vm787, %v784
          %v790 = vpack.c.bf16 %v776, %v773
          %v792 = vunpack.c.l.b16 %v790
          %v793 = vunpack.c.h.b16 %v790
          %v794 = vpack.c.b16 %v792, %v792
          %v795 = vpack.c.b16 %v793, %v793
          %798 = vst.msk [vmem:[#allocation3] sm:$0xf] %vm787, %v794
          %799 = vst.msk [vmem:[#allocation3 + $0x4] sm:$0xf] %vm787, %v795
          %800 = vrot.lane.b32.xlu0 %v783, 112
          %v801 = vpop.permute.xlu0 %800
          %802 = vrot.lane.b32.xlu0 %v784, 112
          %v803 = vpop.permute.xlu0 %802
          %s806 = scalar_lea.vmem [#allocation2], 8
          %807 = vst.msk [vmem:[%s806] sm:$0xf] %vm787, %v801
          %808 = vst.msk [vmem:[%s806 + $0x4] sm:$0xf] %vm787, %v803
          %809 = vrot.lane.b32.xlu0 %v794, 112
          %v810 = vpop.permute.xlu0 %809
          %811 = vrot.lane.b32.xlu0 %v795, 112
          %v812 = vpop.permute.xlu0 %811
          %s815 = scalar_lea.vmem [#allocation3], 8
          %816 = vst.msk [vmem:[%s815] sm:$0xf] %vm787, %v810
          %817 = vst.msk [vmem:[%s815 + $0x4] sm:$0xf] %vm787, %v812
        $region116: #{tpu_custom_call.1} parent=87 // pred_fallthru
          _
        %s818 = smul.u32 %s40, 8
        %s819 = scalar_lea.vmem %s638, %s818
        %v820 = vld [vmem:[%s819] sm:$0xff]
        %v821 = vpack.c.bf16 %v820, %v820
        %v822 = vld [vmem:[%s1] sm:$0xf]
        %v823 = vld [vmem:[%s1 + $0x4] sm:$0xf]
        %v824 = vld [vmem:[%s1 + $0x8] sm:$0xf]
        %v825 = vld [vmem:[%s1 + $0xc] sm:$0xf]
        %v826 = vld [vmem:[#allocation4] sm:$0x1]
        %v828 = vlaneseq
        %v829 = vshrl.u32 %v828, 7
        %v830 = vsub.s32 0, %v829
        %v831 = vrot.slane %v826, %v830
        %v837 = vunpack.c.l.b16 %v822
        %v838 = vunpack.c.l.b16 %v823
        %v839 = vunpack.c.l.b16 %v824
        %v840 = vunpack.c.l.b16 %v825
        %v841 = vpack.c.b16 %v838, %v837
        %v842 = vpack.c.b16 %v840, %v839
        %vm845 = vcmask 261120
        %v847 = vsel %vm845, %v821, 0
        %849 = vmatprep.subr.bf16.mxu0 0
        %850 = vmatpush1.bf16.msra.mxu0 0
        %851 = vmatprep.subr.bf16.mxu0 0
        %852 = vmatpush1.bf16.msra.mxu0 0
        %853 = vmatprep.subr.bf16.mxu0 0
        %854 = vmatpush1.bf16.msra.mxu0 0
        %855 = vmatprep.subr.bf16.mxu0 0
        %856 = vmatpush1.bf16.msra.mxu0 0
        %857 = vmatprep.subr.bf16.mxu0 0
        %858 = vmatpush1.bf16.msra.mxu0 0
        %859 = vmatprep.subr.bf16.mxu0 0
        %860 = vmatpush1.bf16.msra.mxu0 0
        %861 = vmatprep.subr.bf16.mxu0 0
        %862 = vmatpush1.bf16.msra.mxu0 %v842
        %863 = vmatprep.subr.bf16.mxu0 0
        %864 = vmatpush1.bf16.msra.mxu0 %v841
        %865 = vmatprep.subr.bf16.mxu0 0
        %866 = vmatpush2.bf16.msra.mxu0 0
        %867 = vmatprep.subr.bf16.mxu0 0
        %868 = vmatpush2.bf16.msra.mxu0 0
        %869 = vmatprep.subr.bf16.mxu0 0
        %870 = vmatpush2.bf16.msra.mxu0 0
        %871 = vmatprep.subr.bf16.mxu0 0
        %872 = vmatpush2.bf16.msra.mxu0 0
        %873 = vmatprep.subr.bf16.mxu0 0
        %874 = vmatpush2.bf16.msra.mxu0 0
        %875 = vmatprep.subr.bf16.mxu0 0
        %876 = vmatpush2.bf16.msra.mxu0 0
        %877 = vmatprep.subr.bf16.mxu0 0
        %878 = vmatpush2.bf16.msra.mxu0 0
        %879 = vmatprep.subr.bf16.mxu0 0
        %880 = vmatpush2.bf16.msra.mxu0 0
        %881 = vmatprep.mubr.bf16.mxu0 0
        %882 = vmatmul.mubr.bf16.gmra.mxu0 %v847
        %v883 = vpop.f32.mrf.mxu0
        %v884 = vadd.f32 %v831, %v883
        %v885 = vpop.f32.mrf.mxu0
        %v886 = vpop.f32.mrf.mxu0
        %v887 = vpop.f32.mrf.mxu0
        %888 = vdwg.mxu0
        %v889 = vmul.f32 %v884, 0.25
        %v890 = vpack.c.bf16 %v889, %v889
        %892 = vrot.lane.b32.xlu0 %v890, 112
        %v893 = vpop.permute.xlu0 %892
        %v894 = vlaneseq
        %v895 = vshrl.u32 %v894, 7
        %v896 = vstv %s818
        %v897 = vadd.s32 %v896, %v895
        %s898 = sadd.s32 %s40, 1
        // While loop
        $region117: #{tpu_custom_call.1} parent=87 // loop_pre_header
          _
        $region118: #{tpu_custom_call.1} parent=87 // loop_header
          %s900 = sphi 0, %s902
          %p901 = scmp.ge.s32.totalorder %s900, %s898
          %v905 = vphi -1e+30, %v1031
          %v906 = vphi -1e+30, %v1032
          %v907 = vphi 0.0, %v1053
          %v908 = vphi 0.0, %v1054
          %v909 = vphi 0.0, %v1152
          %v910 = vphi 0.0, %v1153
        $region119: #{tpu_custom_call.1} parent=87 // loop_header_branch
          %904 = sbr.rel (%p901) target = $region123
        $region120: #{tpu_custom_call.1} parent=87 // loop_body
          %s911 = smul.u32 %s900, 8
          %s912 = sshra.s32 %s911, 3
          %s913 = sand.u32 %s911, 7
          %s914 = smul.addr %s912, 4
          %s915 = scalar_lea.vmem [#allocation2], %s914
          %v916 = vld [vmem:[%s915] sm:$0xf]
          %v917 = vld [vmem:[%s915 + $0x8] sm:$0xf]
          %s918 = smul.addr %s912, 4
          %s919 = scalar_lea.vmem [#allocation3], %s918
          %v920 = vld [vmem:[%s919] sm:$0xf]
          %v921 = vld [vmem:[%s919 + $0x8] sm:$0xf]
          %vm922 = vcmask 130048
          %v924 = vsel %vm922, %v890, 0
          %v927 = vsel %vm922, %v916, 0
          %929 = vmatprep.subr.bf16.mxu0 0
          %930 = vmatpush1.bf16.xpose.msra.mxu0 0
          %931 = vmatprep.subr.bf16.mxu0 0
          %932 = vmatpush1.bf16.xpose.msra.mxu0 0
          %933 = vmatprep.subr.bf16.mxu0 0
          %934 = vmatpush1.bf16.xpose.msra.mxu0 0
          %935 = vmatprep.subr.bf16.mxu0 0
          %936 = vmatpush1.bf16.xpose.msra.mxu0 0
          %937 = vmatprep.subr.bf16.mxu0 0
          %938 = vmatpush1.bf16.xpose.msra.mxu0 0
          %939 = vmatprep.subr.bf16.mxu0 0
          %940 = vmatpush1.bf16.xpose.msra.mxu0 0
          %941 = vmatprep.subr.bf16.mxu0 0
          %942 = vmatpush1.bf16.xpose.msra.mxu0 0
          %943 = vmatprep.subr.bf16.mxu0 0
          %944 = vmatpush1.bf16.xpose.msra.mxu0 %v927
          %945 = vmatprep.subr.bf16.mxu0 0
          %946 = vmatpush2.bf16.xpose.msra.mxu0 0
          %947 = vmatprep.subr.bf16.mxu0 0
          %948 = vmatpush2.bf16.xpose.msra.mxu0 0
          %949 = vmatprep.subr.bf16.mxu0 0
          %950 = vmatpush2.bf16.xpose.msra.mxu0 0
          %951 = vmatprep.subr.bf16.mxu0 0
          %952 = vmatpush2.bf16.xpose.msra.mxu0 0
          %953 = vmatprep.subr.bf16.mxu0 0
          %954 = vmatpush2.bf16.xpose.msra.mxu0 0
          %955 = vmatprep.subr.bf16.mxu0 0
          %956 = vmatpush2.bf16.xpose.msra.mxu0 0
          %957 = vmatprep.subr.bf16.mxu0 0
          %958 = vmatpush2.bf16.xpose.msra.mxu0 0
          %959 = vmatprep.subr.bf16.mxu0 0
          %960 = vmatpush2.bf16.xpose.msra.mxu0 0
          %961 = vmatprep.mubr.bf16.mxu0 0
          %962 = vmatmul.mubr.bf16.gmra.mxu0 %v924
          %v963 = vpop.f32.mrf.mxu0
          %v964 = vadd.f32 0.0, %v963
          %v965 = vpop.f32.mrf.mxu0
          %v966 = vpop.f32.mrf.mxu0
          %v967 = vpop.f32.mrf.mxu0
          %968 = vdwg.mxu0
          %v970 = vsel %vm922, %v893, 0
          %v973 = vsel %vm922, %v917, 0
          %975 = vmatprep.subr.bf16.mxu0 0
          %976 = vmatpush1.bf16.xpose.msra.mxu0 0
          %977 = vmatprep.subr.bf16.mxu0 0
          %978 = vmatpush1.bf16.xpose.msra.mxu0 0
          %979 = vmatprep.subr.bf16.mxu0 0
          %980 = vmatpush1.bf16.xpose.msra.mxu0 0
          %981 = vmatprep.subr.bf16.mxu0 0
          %982 = vmatpush1.bf16.xpose.msra.mxu0 0
          %983 = vmatprep.subr.bf16.mxu0 0
          %984 = vmatpush1.bf16.xpose.msra.mxu0 0
          %985 = vmatprep.subr.bf16.mxu0 0
          %986 = vmatpush1.bf16.xpose.msra.mxu0 0
          %987 = vmatprep.subr.bf16.mxu0 0
          %988 = vmatpush1.bf16.xpose.msra.mxu0 0
          %989 = vmatprep.subr.bf16.mxu0 0
          %990 = vmatpush1.bf16.xpose.msra.mxu0 %v973
          %991 = vmatprep.subr.bf16.mxu0 0
          %992 = vmatpush2.bf16.xpose.msra.mxu0 0
          %993 = vmatprep.subr.bf16.mxu0 0
          %994 = vmatpush2.bf16.xpose.msra.mxu0 0
          %995 = vmatprep.subr.bf16.mxu0 0
          %996 = vmatpush2.bf16.xpose.msra.mxu0 0
          %997 = vmatprep.subr.bf16.mxu0 0
          %998 = vmatpush2.bf16.xpose.msra.mxu0 0
          %999 = vmatprep.subr.bf16.mxu0 0
          %1000 = vmatpush2.bf16.xpose.msra.mxu0 0
          %1001 = vmatprep.subr.bf16.mxu0 0
          %1002 = vmatpush2.bf16.xpose.msra.mxu0 0
          %1003 = vmatprep.subr.bf16.mxu0 0
          %1004 = vmatpush2.bf16.xpose.msra.mxu0 0
          %1005 = vmatprep.subr.bf16.mxu0 0
          %1006 = vmatpush2.bf16.xpose.msra.mxu0 0
          %1007 = vmatprep.mubr.bf16.mxu0 0
          %1008 = vmatmul.mubr.bf16.gmra.mxu0 %v970
          %v1009 = vpop.f32.mrf.mxu0
          %v1010 = vadd.f32 0.0, %v1009
          %v1011 = vpop.f32.mrf.mxu0
          %v1012 = vpop.f32.mrf.mxu0
          %v1013 = vpop.f32.mrf.mxu0
          %1014 = vdwg.mxu0
          %v1015 = vlaneseq
          %v1016 = vand.u32 %v1015, 127
          %v1017 = vstv %s911
          %v1018 = vadd.s32 %v1017, %v1016
          %vm1019 = vcmp.le.s32.totalorder %v1018, %v897
          %v1020 = vsel %vm1019, 1, 0
          %vm1021 = vcmp.eq.s32.totalorder %v1020, 1
          %v1022 = vsel %vm1021, %v964, -1e+30
          %v1023 = vsel %vm1021, %v1010, -1e+30
          %vm1024 = vcmask 64512
          %v1025 = vsel %vm1024, %v1022, -inf
          %1026 = vmax.xlane.f32.xlu0 %v1025
          %v1027 = vpop.xlane.xlu0 %1026
          %v1028 = vsel %vm1024, %v1023, -inf
          %1029 = vmax.xlane.f32.xlu0 %v1028
          %v1030 = vpop.xlane.xlu0 %1029
          %v1031 = vmax.f32 %v905, %v1027
          %v1032 = vmax.f32 %v906, %v1030
          %v1033 = vsub.f32 %v905, %v1031
          %v1034 = vsub.f32 %v906, %v1032
          %v1035 = vmul.f32 %v1033, 1.442695
          %v1036 = vpow.pop %v1035
          %v1037 = vmul.f32 %v1034, 1.442695
          %v1038 = vpow.pop %v1037
          %v1039 = vsub.f32 %v1022, %v1031
          %v1040 = vsub.f32 %v1023, %v1032
          %v1041 = vmul.f32 %v1039, 1.442695
          %v1042 = vpow.pop %v1041
          %v1043 = vmul.f32 %v1040, 1.442695
          %v1044 = vpow.pop %v1043
          %v1045 = vmul.f32 %v1036, %v907
          %v1046 = vmul.f32 %v1038, %v908
          %v1047 = vsel %vm1024, %v1042, 0.0
          %1048 = vadd.xlane.f32.xlu0 %v1047
          %v1049 = vpop.xlane.xlu0 %1048
          %v1050 = vsel %vm1024, %v1044, 0.0
          %1051 = vadd.xlane.f32.xlu0 %v1050
          %v1052 = vpop.xlane.xlu0 %1051
          %v1053 = vadd.f32 %v1045, %v1049
          %v1054 = vadd.f32 %v1046, %v1052
          %v1055 = vmul.f32 %v1036, %v909
          %v1056 = vmul.f32 %v1038, %v910
          %v1057 = vpack.c.bf16 %v1042, %v1042
          %v1058 = vpack.c.bf16 %v1044, %v1044
          %v1060 = vsel %vm1024, %v1057, 0
          %vm1062 = vcmask 1043456
          %v1064 = vsel %vm1062, %v920, 0
          %1066 = vmatprep.subr.bf16.mxu0 0
          %1067 = vmatpush1.bf16.msra.mxu0 0
          %1068 = vmatprep.subr.bf16.mxu0 0
          %1069 = vmatpush1.bf16.msra.mxu0 0
          %1070 = vmatprep.subr.bf16.mxu0 0
          %1071 = vmatpush1.bf16.msra.mxu0 0
          %1072 = vmatprep.subr.bf16.mxu0 0
          %1073 = vmatpush1.bf16.msra.mxu0 0
          %1074 = vmatprep.subr.bf16.mxu0 0
          %1075 = vmatpush1.bf16.msra.mxu0 0
          %1076 = vmatprep.subr.bf16.mxu0 0
          %1077 = vmatpush1.bf16.msra.mxu0 0
          %1078 = vmatprep.subr.bf16.mxu0 0
          %1079 = vmatpush1.bf16.msra.mxu0 0
          %1080 = vmatprep.subr.bf16.mxu0 0
          %1081 = vmatpush1.bf16.msra.mxu0 %v1064
          %1082 = vmatprep.subr.bf16.mxu0 0
          %1083 = vmatpush2.bf16.msra.mxu0 0
          %1084 = vmatprep.subr.bf16.mxu0 0
          %1085 = vmatpush2.bf16.msra.mxu0 0
          %1086 = vmatprep.subr.bf16.mxu0 0
          %1087 = vmatpush2.bf16.msra.mxu0 0
          %1088 = vmatprep.subr.bf16.mxu0 0
          %1089 = vmatpush2.bf16.msra.mxu0 0
          %1090 = vmatprep.subr.bf16.mxu0 0
          %1091 = vmatpush2.bf16.msra.mxu0 0
          %1092 = vmatprep.subr.bf16.mxu0 0
          %1093 = vmatpush2.bf16.msra.mxu0 0
          %1094 = vmatprep.subr.bf16.mxu0 0
          %1095 = vmatpush2.bf16.msra.mxu0 0
          %1096 = vmatprep.subr.bf16.mxu0 0
          %1097 = vmatpush2.bf16.msra.mxu0 0
          %1098 = vmatprep.mubr.bf16.mxu0 0
          %1099 = vmatmul.mubr.bf16.gmra.mxu0 %v1060
          %v1100 = vpop.f32.mrf.mxu0
          %v1101 = vadd.f32 0.0, %v1100
          %v1102 = vpop.f32.mrf.mxu0
          %v1103 = vpop.f32.mrf.mxu0
          %v1104 = vpop.f32.mrf.mxu0
          %1105 = vdwg.mxu0
          %v1107 = vsel %vm1024, %v1058, 0
          %v1110 = vsel %vm1062, %v921, 0
          %1112 = vmatprep.subr.bf16.mxu0 0
          %1113 = vmatpush1.bf16.msra.mxu0 0
          %1114 = vmatprep.subr.bf16.mxu0 0
          %1115 = vmatpush1.bf16.msra.mxu0 0
          %1116 = vmatprep.subr.bf16.mxu0 0
          %1117 = vmatpush1.bf16.msra.mxu0 0
          %1118 = vmatprep.subr.bf16.mxu0 0
          %1119 = vmatpush1.bf16.msra.mxu0 0
          %1120 = vmatprep.subr.bf16.mxu0 0
          %1121 = vmatpush1.bf16.msra.mxu0 0
          %1122 = vmatprep.subr.bf16.mxu0 0
          %1123 = vmatpush1.bf16.msra.mxu0 0
          %1124 = vmatprep.subr.bf16.mxu0 0
          %1125 = vmatpush1.bf16.msra.mxu0 0
          %1126 = vmatprep.subr.bf16.mxu0 0
          %1127 = vmatpush1.bf16.msra.mxu0 %v1110
          %1128 = vmatprep.subr.bf16.mxu0 0
          %1129 = vmatpush2.bf16.msra.mxu0 0
          %1130 = vmatprep.subr.bf16.mxu0 0
          %1131 = vmatpush2.bf16.msra.mxu0 0
          %1132 = vmatprep.subr.bf16.mxu0 0
          %1133 = vmatpush2.bf16.msra.mxu0 0
          %1134 = vmatprep.subr.bf16.mxu0 0
          %1135 = vmatpush2.bf16.msra.mxu0 0
          %1136 = vmatprep.subr.bf16.mxu0 0
          %1137 = vmatpush2.bf16.msra.mxu0 0
          %1138 = vmatprep.subr.bf16.mxu0 0
          %1139 = vmatpush2.bf16.msra.mxu0 0
          %1140 = vmatprep.subr.bf16.mxu0 0
          %1141 = vmatpush2.bf16.msra.mxu0 0
          %1142 = vmatprep.subr.bf16.mxu0 0
          %1143 = vmatpush2.bf16.msra.mxu0 0
          %1144 = vmatprep.mubr.bf16.mxu0 0
          %1145 = vmatmul.mubr.bf16.gmra.mxu0 %v1107
          %v1146 = vpop.f32.mrf.mxu0
          %v1147 = vadd.f32 0.0, %v1146
          %v1148 = vpop.f32.mrf.mxu0
          %v1149 = vpop.f32.mrf.mxu0
          %v1150 = vpop.f32.mrf.mxu0
          %1151 = vdwg.mxu0
          %v1152 = vadd.f32 %v1055, %v1101
          %v1153 = vadd.f32 %v1056, %v1147
        $region121: #{tpu_custom_call.1} parent=87 // loop_footer
          %s902 = sadd.s32 %s900, 1
        $region122: #{tpu_custom_call.1} parent=87 // loop_footer_branch
          %899 = sbr.rel target = $region118
        $region123: #{tpu_custom_call.1} parent=87 // loop_exit
          _
        %v1154 = vrcp.pop %v907
        %v1155 = vrcp.pop %v908
        %v1156 = vmul.f32 %v909, %v1154
        %v1157 = vmul.f32 %v910, %v1155
        %1159 = vrot.lane.b32.xlu0 %v1157, 16
        %v1160 = vpop.permute.xlu0 %1159
        %vm1162 = vcmask 130048
        %v1163 = vsel %vm1162, %v1156, %v1160
        %v1164 = vpack.c.bf16 %v1163, %v1163
        %v1165 = vld [vmem:[#allocation10] sm:$0xf]
        %v1166 = vld [vmem:[#allocation10 + $0x4] sm:$0xf]
        %v1167 = vld [vmem:[#allocation10 + $0x8] sm:$0xf]
        %v1168 = vld [vmem:[#allocation10 + $0xc] sm:$0xf]
        %v1169 = vld [vmem:[#allocation12] sm:$0x1]
        %v1171 = vlaneseq
        %v1172 = vshrl.u32 %v1171, 7
        %v1173 = vsub.s32 0, %v1172
        %v1174 = vrot.slane %v1169, %v1173
        %v1180 = vunpack.c.l.b16 %v1165
        %v1181 = vunpack.c.l.b16 %v1166
        %v1182 = vunpack.c.l.b16 %v1167
        %v1183 = vunpack.c.l.b16 %v1168
        %v1184 = vpack.c.b16 %v1181, %v1180
        %v1185 = vpack.c.b16 %v1183, %v1182
        %v1189 = vsel %vm845, %v1164, 0
        %1191 = vmatprep.subr.bf16.mxu0 0
        %1192 = vmatpush1.bf16.msra.mxu0 0
        %1193 = vmatprep.subr.bf16.mxu0 0
        %1194 = vmatpush1.bf16.msra.mxu0 0
        %1195 = vmatprep.subr.bf16.mxu0 0
        %1196 = vmatpush1.bf16.msra.mxu0 0
        %1197 = vmatprep.subr.bf16.mxu0 0
        %1198 = vmatpush1.bf16.msra.mxu0 0
        %1199 = vmatprep.subr.bf16.mxu0 0
        %1200 = vmatpush1.bf16.msra.mxu0 0
        %1201 = vmatprep.subr.bf16.mxu0 0
        %1202 = vmatpush1.bf16.msra.mxu0 0
        %1203 = vmatprep.subr.bf16.mxu0 0
        %1204 = vmatpush1.bf16.msra.mxu0 %v1185
        %1205 = vmatprep.subr.bf16.mxu0 0
        %1206 = vmatpush1.bf16.msra.mxu0 %v1184
        %1207 = vmatprep.subr.bf16.mxu0 0
        %1208 = vmatpush2.bf16.msra.mxu0 0
        %1209 = vmatprep.subr.bf16.mxu0 0
        %1210 = vmatpush2.bf16.msra.mxu0 0
        %1211 = vmatprep.subr.bf16.mxu0 0
        %1212 = vmatpush2.bf16.msra.mxu0 0
        %1213 = vmatprep.subr.bf16.mxu0 0
        %1214 = vmatpush2.bf16.msra.mxu0 0
        %1215 = vmatprep.subr.bf16.mxu0 0
        %1216 = vmatpush2.bf16.msra.mxu0 0
        %1217 = vmatprep.subr.bf16.mxu0 0
        %1218 = vmatpush2.bf16.msra.mxu0 0
        %1219 = vmatprep.subr.bf16.mxu0 0
        %1220 = vmatpush2.bf16.msra.mxu0 0
        %1221 = vmatprep.subr.bf16.mxu0 0
        %1222 = vmatpush2.bf16.msra.mxu0 0
        %1223 = vmatprep.mubr.bf16.mxu0 0
        %1224 = vmatmul.mubr.bf16.gmra.mxu0 %v1189
        %v1225 = vpop.f32.mrf.mxu0
        %v1226 = vadd.f32 %v1174, %v1225
        %v1227 = vpop.f32.mrf.mxu0
        %v1228 = vpop.f32.mrf.mxu0
        %v1229 = vpop.f32.mrf.mxu0
        %1230 = vdwg.mxu0
        %v1231 = vadd.f32 %v820, %v1226
        %v1232 = vld [vmem:[#allocation13] sm:$0x1]
        %v1233 = vld [vmem:[%s10] sm:$0x1]
        %v1234 = vsel %vm845, %v1231, 0.0
        %1235 = vadd.xlane.f32.xlu0 %v1234
        %v1236 = vpop.xlane.xlu0 %1235
        %v1237 = vrcp.pop 32.0
        %v1238 = vmul.f32 %v1236, %v1237
        %v1239 = vsub.f32 %v1231, %v1238
        %v1240 = vmul.f32 %v1239, %v1239
        %v1241 = vsel %vm845, %v1240, 0.0
        %1242 = vadd.xlane.f32.xlu0 %v1241
        %v1243 = vpop.xlane.xlu0 %1242
        %v1244 = vmul.f32 %v1243, %v1237
        %v1245 = vadd.f32 %v1244, 1e-05
        %v1246 = vrsqrt.pop %v1245
        %v1247 = vmul.f32 %v1239, %v1246
        %v1249 = vlaneseq
        %v1250 = vshrl.u32 %v1249, 7
        %v1251 = vsub.s32 0, %v1250
        %v1252 = vrot.slane %v1232, %v1251
        %v1254 = vmul.f32 %v1247, %v1252
        %v1256 = vlaneseq
        %v1257 = vshrl.u32 %v1256, 7
        %v1258 = vsub.s32 0, %v1257
        %v1259 = vrot.slane %v1233, %v1258
        %v1261 = vadd.f32 %v1254, %v1259
        %v1262 = vpack.c.bf16 %v1261, %v1261
        %v1263 = vld [vmem:[%s11] sm:$0xf]
        %v1264 = vld [vmem:[%s11 + $0x4] sm:$0xf]
        %v1265 = vld [vmem:[%s11 + $0x8] sm:$0xf]
        %v1266 = vld [vmem:[%s11 + $0xc] sm:$0xf]
        %v1267 = vld [vmem:[%s12] sm:$0x1]
        %v1269 = vlaneseq
        %v1270 = vshrl.u32 %v1269, 7
        %v1271 = vsub.s32 0, %v1270
        %v1272 = vrot.slane %v1267, %v1271
        %v1278 = vunpack.c.l.b16 %v1263
        %v1279 = vunpack.c.l.b16 %v1264
        %v1280 = vunpack.c.l.b16 %v1265
        %v1281 = vunpack.c.l.b16 %v1266
        %v1282 = vpack.c.b16 %v1279, %v1278
        %v1283 = vpack.c.b16 %v1281, %v1280
        %v1287 = vsel %vm845, %v1262, 0
        %1289 = vmatprep.subr.bf16.mxu0 0
        %1290 = vmatpush1.bf16.msra.mxu0 0
        %1291 = vmatprep.subr.bf16.mxu0 0
        %1292 = vmatpush1.bf16.msra.mxu0 0
        %1293 = vmatprep.subr.bf16.mxu0 0
        %1294 = vmatpush1.bf16.msra.mxu0 0
        %1295 = vmatprep.subr.bf16.mxu0 0
        %1296 = vmatpush1.bf16.msra.mxu0 0
        %1297 = vmatprep.subr.bf16.mxu0 0
        %1298 = vmatpush1.bf16.msra.mxu0 0
        %1299 = vmatprep.subr.bf16.mxu0 0
        %1300 = vmatpush1.bf16.msra.mxu0 0
        %1301 = vmatprep.subr.bf16.mxu0 0
        %1302 = vmatpush1.bf16.msra.mxu0 %v1283
        %1303 = vmatprep.subr.bf16.mxu0 0
        %1304 = vmatpush1.bf16.msra.mxu0 %v1282
        %1305 = vmatprep.subr.bf16.mxu0 0
        %1306 = vmatpush2.bf16.msra.mxu0 0
        %1307 = vmatprep.subr.bf16.mxu0 0
        %1308 = vmatpush2.bf16.msra.mxu0 0
        %1309 = vmatprep.subr.bf16.mxu0 0
        %1310 = vmatpush2.bf16.msra.mxu0 0
        %1311 = vmatprep.subr.bf16.mxu0 0
        %1312 = vmatpush2.bf16.msra.mxu0 0
        %1313 = vmatprep.subr.bf16.mxu0 0
        %1314 = vmatpush2.bf16.msra.mxu0 0
        %1315 = vmatprep.subr.bf16.mxu0 0
        %1316 = vmatpush2.bf16.msra.mxu0 0
        %1317 = vmatprep.subr.bf16.mxu0 0
        %1318 = vmatpush2.bf16.msra.mxu0 0
        %1319 = vmatprep.subr.bf16.mxu0 0
        %1320 = vmatpush2.bf16.msra.mxu0 0
        %1321 = vmatprep.mubr.bf16.mxu0 0
        %1322 = vmatmul.mubr.bf16.gmra.mxu0 %v1287
        %v1323 = vpop.f32.mrf.mxu0
        %v1324 = vadd.f32 %v1272, %v1323
        %v1325 = vpop.f32.mrf.mxu0
        %v1326 = vpop.f32.mrf.mxu0
        %v1327 = vpop.f32.mrf.mxu0
        %1328 = vdwg.mxu0
        %v1329 = vmul.f32 %v1324, 0.5
        %v1330 = vmul.f32 %v1324, 0.70710677
        %v1331 = vand.u32 2147483647, %v1330
        %v1332 = vmul.f32 %v1331, 0.3275911
        %v1333 = vadd.f32 %v1332, 1.0
        %v1334 = vrcp.pop %v1333
        %v1335 = vmul.f32 1.0, %v1334
        %v1336 = vmul.f32 %v1335, 1.0614054
        %v1337 = vsub.f32 %v1336, 1.4531521
        %v1338 = vmul.f32 %v1337, %v1335
        %v1339 = vadd.f32 %v1338, 1.4214138
        %v1340 = vmul.f32 %v1339, %v1335
        %v1341 = vsub.f32 %v1340, 0.28449672
        %v1342 = vmul.f32 %v1341, %v1335
        %v1343 = vadd.f32 %v1342, 0.2548296
        %v1344 = vmul.f32 %v1343, %v1335
        %v1345 = vsub.f32 0.0, %v1331
        %v1346 = vmul.f32 %v1345, %v1331
        %v1347 = vmul.f32 %v1346, 1.442695
        %v1348 = vpow.pop %v1347
        %v1349 = vmul.f32 %v1344, %v1348
        %v1350 = vsub.f32 1.0, %v1349
        %vm1351 = vcmp.ge.f32.partialorder %v1330, 0.0
        %v1352 = vsub.f32 0.0, %v1350
        %v1353 = vsel %vm1351, %v1350, %v1352
        %v1354 = vadd.f32 %v1353, 1.0
        %v1355 = vmul.f32 %v1329, %v1354
        %v1356 = vpack.c.bf16 %v1355, %v1355
        %v1357 = vld [vmem:[%s13] sm:$0xf]
        %v1358 = vld [vmem:[%s13 + $0x4] sm:$0xf]
        %v1359 = vld [vmem:[%s13 + $0x8] sm:$0xf]
        %v1360 = vld [vmem:[%s13 + $0xc] sm:$0xf]
        %v1361 = vld [vmem:[%s13 + $0x10] sm:$0xf]
        %v1362 = vld [vmem:[%s13 + $0x14] sm:$0xf]
        %v1363 = vld [vmem:[%s13 + $0x18] sm:$0xf]
        %v1364 = vld [vmem:[%s13 + $0x1c] sm:$0xf]
        %v1365 = vld [vmem:[%s13 + $0x20] sm:$0xf]
        %v1366 = vld [vmem:[%s13 + $0x24] sm:$0xf]
        %v1367 = vld [vmem:[%s13 + $0x28] sm:$0xf]
        %v1368 = vld [vmem:[%s13 + $0x2c] sm:$0xf]
        %v1369 = vld [vmem:[%s13 + $0x30] sm:$0xf]
        %v1370 = vld [vmem:[%s13 + $0x34] sm:$0xf]
        %v1371 = vld [vmem:[%s13 + $0x38] sm:$0xf]
        %v1372 = vld [vmem:[%s13 + $0x3c] sm:$0xf]
        %v1373 = vld [vmem:[%s14] sm:$0x1]
        %v1375 = vlaneseq
        %v1376 = vshrl.u32 %v1375, 7
        %v1377 = vsub.s32 0, %v1376
        %v1378 = vrot.slane %v1373, %v1377
        %v1396 = vunpack.c.l.b16 %v1357
        %v1397 = vunpack.c.l.b16 %v1358
        %v1398 = vunpack.c.l.b16 %v1359
        %v1399 = vunpack.c.l.b16 %v1360
        %v1400 = vunpack.c.l.b16 %v1361
        %v1401 = vunpack.c.l.b16 %v1362
        %v1402 = vunpack.c.l.b16 %v1363
        %v1403 = vunpack.c.l.b16 %v1364
        %v1404 = vunpack.c.l.b16 %v1365
        %v1405 = vunpack.c.l.b16 %v1366
        %v1406 = vunpack.c.l.b16 %v1367
        %v1407 = vunpack.c.l.b16 %v1368
        %v1408 = vunpack.c.l.b16 %v1369
        %v1409 = vunpack.c.l.b16 %v1370
        %v1410 = vunpack.c.l.b16 %v1371
        %v1411 = vunpack.c.l.b16 %v1372
        %v1412 = vpack.c.b16 %v1397, %v1396
        %v1413 = vpack.c.b16 %v1399, %v1398
        %v1414 = vpack.c.b16 %v1401, %v1400
        %v1415 = vpack.c.b16 %v1403, %v1402
        %v1416 = vpack.c.b16 %v1405, %v1404
        %v1417 = vpack.c.b16 %v1407, %v1406
        %v1418 = vpack.c.b16 %v1409, %v1408
        %v1419 = vpack.c.b16 %v1411, %v1410
        %1428 = vmatprep.subr.bf16.mxu0 0
        %1429 = vmatpush1.bf16.msra.mxu0 %v1419
        %1430 = vmatprep.subr.bf16.mxu0 0
        %1431 = vmatpush1.bf16.msra.mxu0 %v1418
        %1432 = vmatprep.subr.bf16.mxu0 0
        %1433 = vmatpush1.bf16.msra.mxu0 %v1417
        %1434 = vmatprep.subr.bf16.mxu0 0
        %1435 = vmatpush1.bf16.msra.mxu0 %v1416
        %1436 = vmatprep.subr.bf16.mxu0 0
        %1437 = vmatpush1.bf16.msra.mxu0 %v1415
        %1438 = vmatprep.subr.bf16.mxu0 0
        %1439 = vmatpush1.bf16.msra.mxu0 %v1414
        %1440 = vmatprep.subr.bf16.mxu0 0
        %1441 = vmatpush1.bf16.msra.mxu0 %v1413
        %1442 = vmatprep.subr.bf16.mxu0 0
        %1443 = vmatpush1.bf16.msra.mxu0 %v1412
        %1444 = vmatprep.subr.bf16.mxu0 0
        %1445 = vmatpush2.bf16.msra.mxu0 0
        %1446 = vmatprep.subr.bf16.mxu0 0
        %1447 = vmatpush2.bf16.msra.mxu0 0
        %1448 = vmatprep.subr.bf16.mxu0 0
        %1449 = vmatpush2.bf16.msra.mxu0 0
        %1450 = vmatprep.subr.bf16.mxu0 0
        %1451 = vmatpush2.bf16.msra.mxu0 0
        %1452 = vmatprep.subr.bf16.mxu0 0
        %1453 = vmatpush2.bf16.msra.mxu0 0
        %1454 = vmatprep.subr.bf16.mxu0 0
        %1455 = vmatpush2.bf16.msra.mxu0 0
        %1456 = vmatprep.subr.bf16.mxu0 0
        %1457 = vmatpush2.bf16.msra.mxu0 0
        %1458 = vmatprep.subr.bf16.mxu0 0
        %1459 = vmatpush2.bf16.msra.mxu0 0
        %1460 = vmatprep.mubr.bf16.mxu0 0
        %1461 = vmatmul.mubr.bf16.gmra.mxu0 %v1356
        %v1462 = vpop.f32.mrf.mxu0
        %v1463 = vadd.f32 %v1378, %v1462
        %v1464 = vpop.f32.mrf.mxu0
        %v1465 = vpop.f32.mrf.mxu0
        %v1466 = vpop.f32.mrf.mxu0
        %1467 = vdwg.mxu0
        %v1468 = vadd.f32 %v1261, %v1463
        %v1469 = vld [vmem:[%s15] sm:$0x1]
        %v1470 = vld [vmem:[%s16] sm:$0x1]
        %v1471 = vsel %vm845, %v1468, 0.0
        %1472 = vadd.xlane.f32.xlu0 %v1471
        %v1473 = vpop.xlane.xlu0 %1472
        %v1474 = vmul.f32 %v1473, %v1237
        %v1475 = vsub.f32 %v1468, %v1474
        %v1476 = vmul.f32 %v1475, %v1475
        %v1477 = vsel %vm845, %v1476, 0.0
        %1478 = vadd.xlane.f32.xlu0 %v1477
        %v1479 = vpop.xlane.xlu0 %1478
        %v1480 = vmul.f32 %v1479, %v1237
        %v1481 = vadd.f32 %v1480, 1e-05
        %v1482 = vrsqrt.pop %v1481
        %v1483 = vmul.f32 %v1475, %v1482
        %v1485 = vlaneseq
        %v1486 = vshrl.u32 %v1485, 7
        %v1487 = vsub.s32 0, %v1486
        %v1488 = vrot.slane %v1469, %v1487
        %v1490 = vmul.f32 %v1483, %v1488
        %v1492 = vlaneseq
        %v1493 = vshrl.u32 %v1492, 7
        %v1494 = vsub.s32 0, %v1493
        %v1495 = vrot.slane %v1470, %v1494
        %v1497 = vadd.f32 %v1490, %v1495
        %1498 = vst.msk [vmem:[%s633] sm:$0xff] %vm845, %v1497
        %s1499 = sand.u32 %s419, 1
        %s1500 = scalar_lea.sflag [#allocation6], %s1499
        %s1501 = sand.u32 %s419, 1
        %s1502 = smul.addr %s1501, 8
        %s1503 = scalar_lea.vmem [#allocation15], %s1502
        // Predicated region
        $region124: #{tpu_custom_call.1} parent=87 // pred_check
          %p1504 = pneg %p429
        $region125: #{tpu_custom_call.1} parent=87 // pred_check_branch
          %1506 = sbr.rel (%p1504) target = $region127
        $region126: #{tpu_custom_call.1} parent=87 // pred_region
          %s1508 = ssub.s32 128, 128
          %1509 = vsyncadd %s1500, %s1508
          %s1510 = smul.addr %s39, 2
          %s1511 = sadd.s32 %s40, %s1510
          %s1512 = smul.addr %s1511, 128
          %s1513 = scalar_lea.hbm %s17, %s1512
          %s1515 = sshll.u32 %s1503, 4
          %s1516 = int_to_ptr.vmem [resolvable:$true] %s1515
          %1518 = dma.vmem_to_hbm [thread:$0]  %s1516, 128, %s1513, %s1500
        $region127: #{tpu_custom_call.1} parent=87 // pred_fallthru
          _
      $region88: #{tpu_custom_call.1} parent=5 // pred_fallthru
        _
      %p1519 = scmp.le.s32.totalorder 2, %s30
      // Predicated region
      $region128: #{tpu_custom_call.1} parent=5 // pred_check
        %p1520 = pneg %p1519
      $region129: #{tpu_custom_call.1} parent=5 // pred_check_branch
        %1522 = sbr.rel (%p1520) target = $region131
      $region130: #{tpu_custom_call.1} parent=5 // pred_region
        %s1523 = ssub.s32 %s30, 2
        // Predicated region
        $region132: #{tpu_custom_call.1} parent=130 // pred_check
          %p1524 = pneg %p435
        $region133: #{tpu_custom_call.1} parent=130 // pred_check_branch
          %1526 = sbr.rel (%p1524) target = $region135
        $region134: #{tpu_custom_call.1} parent=130 // pred_region
          %s1527 = sand.u32 %s420, 1
          %s1528 = scalar_lea.sflag [#allocation6], %s1527
          %s1529 = sand.u32 %s420, 1
          %s1530 = smul.addr %s1529, 8
          %s1531 = scalar_lea.vmem [#allocation15], %s1530
          %1532 = dma.done %s1528, 128
        $region135: #{tpu_custom_call.1} parent=130 // pred_fallthru
          _
      $region131: #{tpu_custom_call.1} parent=5 // pred_fallthru
        _
    $region6: #{tpu_custom_call.1} parent=1 // loop_footer
      %s34 = sadd.s32 1, %s30
    $region7: #{tpu_custom_call.1} parent=1 // loop_footer_branch
      %29 = sbr.rel target = $region3
    $region8: #{tpu_custom_call.1} parent=1 // loop_exit
      _
    %1533 = vsyncpa [#allocation5], 1
    %s1534 = scalar_lea.sflag [#allocation5], 1
    %1535 = vsyncpa %s1534, 1
    %1536 = vsyncpa [#allocation8], 1
    %1537 = vsyncpa [#allocation11], 1
    %1538 = vsyncpa [#allocation14], 1
    %1539 = vsyncpa [#allocation6], 1
    %s1540 = scalar_lea.sflag [#allocation6], 1
    %1541 = vsyncpa %s1540, 1

</llo_original>
